<compile_context>
chip_gen: v7x
topology: tpu7x:2x2x1
jax: 0.10.0
libtpu: 0.0.40
codegen_flags: <defaults>
</compile_context>

<pallas_src>
import math

import jax
import jax.numpy as jnp
import numpy as np
from jax import lax
from jax.experimental import pallas as pl
from jax.experimental.pallas import tpu as pltpu


def _make_kernel(*, scale, use_mask):
    def kernel(*refs):
        if use_mask:
            (mask_ref, e_ref, f_ref, q_ref, k_ref, v_ref,
             o_ref, ke_ref, vf_ref) = refs
        else:
            (e_ref, f_ref, q_ref, k_ref, v_ref,
             o_ref, ke_ref, vf_ref) = refs
            mask_ref = None

        # Compute the low-rank projections K' = E @ K, V' = F @ V once per
        # (head, batch) pair; the query-tile axis is innermost, so they are
        # reused from VMEM scratch for all subsequent query tiles.
        @pl.when(pl.program_id(2) == 0)
        def _():
            k = k_ref[...]
            v = v_ref[...]
            if mask_ref is not None:
                # Module semantics: K/V are multiplied by the mask (1 = keep,
                # 0 = drop) — same polarity as the PyTorch code.
                m = mask_ref[...].astype(k.dtype)              # (S, 1)
                k = k * m
                v = v * m
            ke_ref[...] = jnp.dot(
                e_ref[...], k, preferred_element_type=jnp.float32
            ).astype(ke_ref.dtype)                             # (P, D)
            vf_ref[...] = jnp.dot(
                f_ref[...], v, preferred_element_type=jnp.float32
            ).astype(vf_ref.dtype)                             # (P, D)

        # Scale the narrow (TQ, D) Q tile instead of the wide (TQ, P) scores.
        q = q_ref[...] * jnp.asarray(scale, dtype=q_ref.dtype)

        # scores = Q @ K'^T without materializing an explicit transpose.
        s = lax.dot_general(
            q, ke_ref[...],
            dimension_numbers=(((1,), (1,)), ((), ())),
            preferred_element_type=jnp.float32)                # (TQ, P) f32

        m_ = jnp.max(s, axis=-1, keepdims=True)
        p = jnp.exp(s - m_)
        l = jnp.sum(p, axis=-1, keepdims=True)

        # TODO(synk): attention dropout (training-mode stateful RNG masking)
        # is identity at inference and is not implemented here.

        # Unnormalized attn @ V' in the MXU's native dtype, then normalize the
        # narrow (TQ, D) result with the (otherwise idle) EUP reciprocal.
        out = jnp.dot(p.astype(vf_ref.dtype), vf_ref[...],
                      preferred_element_type=jnp.float32)      # (TQ, D) f32
        out = out * pl.reciprocal(l, approx=True)
        o_ref[...] = out.astype(o_ref.dtype)

    return kernel


def linformer_attention(Q, K, V, E, Fp, *, attn_mask=None,
                        key_padding_mask=None, tq=512):
    """Pallas Linformer attention.

    Q, K, V: (B, H, S, D); E, Fp: (H, P, S); key_padding_mask: (B, S) or None.
    attn_mask is accepted for signature parity but (as in the PyTorch module)
    unused. Returns (B, H, S, D).
    """
    del attn_mask  # the original module never uses it
    B, H, S, D = Q.shape
    Hp, P, Se = E.shape
    assert Hp == H and Se == S, "E/F must match (num_heads, P, seq_len)"

    # Query tile size: full S if it fits, otherwise a multiple of 8 (sublane
    # constraint). Ragged last tiles are handled by Pallas block padding.
    tq = min(int(tq), S)
    if tq < S:
        tq = max(8, (tq // 8) * 8)
    num_q = pl.cdiv(S, tq)

    scale = 1.0 / math.sqrt(D)
    use_mask = key_padding_mask is not None
    kernel = _make_kernel(scale=scale, use_mask=use_mask)

    grid = (H, B, num_q)
    ef_spec = pl.BlockSpec((None, P, S), lambda h, b, q: (h, 0, 0))
    kv_spec = pl.BlockSpec((None, None, S, D), lambda h, b, q: (b, h, 0, 0))
    q_spec = pl.BlockSpec((None, None, tq, D), lambda h, b, q: (b, h, q, 0))
    out_spec = pl.BlockSpec((None, None, tq, D), lambda h, b, q: (b, h, q, 0))

    in_specs = [ef_spec, ef_spec, q_spec, kv_spec, kv_spec]
    args = [E, Fp, Q, K, V]
    if use_mask:
        mask = key_padding_mask.astype(Q.dtype).reshape(B, S, 1)
        in_specs = [pl.BlockSpec((None, S, 1), lambda h, b, q: (b, 0, 0))] + in_specs
        args = [mask] + args

    # VMEM budget from the actual block sizes (inputs are double-buffered).
    ef_item = E.dtype.itemsize
    in_item = Q.dtype.itemsize
    est = (2 * 2 * P * S * ef_item      # E and F blocks (x2 buffers each)
           + 2 * 2 * S * D * in_item    # K and V blocks
           + 2 * tq * D * in_item       # Q tiles
           + 2 * tq * D * in_item       # output tiles
           + 2 * P * D * in_item        # K'/V' scratch
           + 4 * tq * P * 4)            # f32 score / exp temporaries (headroom)
    if use_mask:
        est += 2 * S * in_item
    vmem_limit = int(min(max(est * 3 // 2, 32 * 2**20), 60 * 2**20))

    return pl.pallas_call(
        kernel,
        out_shape=jax.ShapeDtypeStruct((B, H, S, D), Q.dtype),
        grid_spec=pltpu.PrefetchScalarGridSpec(
            num_scalar_prefetch=0,
            grid=grid,
            in_specs=in_specs,
            out_specs=out_spec,
            scratch_shapes=[pltpu.VMEM((P, D), Q.dtype),
                            pltpu.VMEM((P, D), Q.dtype)],
        ),
        compiler_params=pltpu.CompilerParams(
            dimension_semantics=("parallel", "parallel", "arbitrary"),
            vmem_limit_bytes=vmem_limit,
        ),
    )(*args)


def _reference(Q, K, V, E, Fp, key_padding_mask=None):
    # Pure-JAX (f32) reference mirroring the PyTorch forward (eval mode).
    D = Q.shape[-1]
    Qf, Kf, Vf = (x.astype(jnp.float32) for x in (Q, K, V))
    Ef, Ff = E.astype(jnp.float32), Fp.astype(jnp.float32)
    if key_padding_mask is not None:
        m = key_padding_mask.astype(jnp.float32)[:, None, :, None]
        Kf = Kf * m
        Vf = Vf * m
    KE = jnp.einsum("hps,bhsd->bhpd", Ef, Kf)
    VF = jnp.einsum("hps,bhsd->bhpd", Ff, Vf)
    dot = jnp.einsum("bhqd,bhpd->bhqp", Qf, KE) / math.sqrt(D)
    attn = jax.nn.softmax(dot, axis=-1)
    return jnp.einsum("bhqp,bhpd->bhqd", attn, VF)


if __name__ == "__main__":
    B, H, D, P = 2, 2, 32, 256
    key = jax.random.PRNGKey(0)
    kq, kk, kv, ke, kf = jax.random.split(key, 5)

    # --- test 1: f32, S=64, no mask (single query tile) ---
    S = 64
    Q = jax.random.normal(kq, (B, H, S, D), dtype=jnp.float32)
    K = jax.random.normal(kk, (B, H, S, D), dtype=jnp.float32)
    V = jax.random.normal(kv, (B, H, S, D), dtype=jnp.float32)
    E = 0.02 * jax.random.normal(ke, (H, P, S), dtype=jnp.float32)
    Fp = 0.02 * jax.random.normal(kf, (H, P, S), dtype=jnp.float32)

    out = jax.block_until_ready(linformer_attention(Q, K, V, E, Fp))
    ref = jax.block_until_ready(_reference(Q, K, V, E, Fp))
    np.testing.assert_allclose(np.asarray(out), np.asarray(ref),
                               atol=2e-3, rtol=2e-3)

    # --- test 2: f32, S=128, tq=32 (query tiling + scratch reuse) + mask ---
    S = 128
    Q = jax.random.normal(kq, (B, H, S, D), dtype=jnp.float32)
    K = jax.random.normal(kk, (B, H, S, D), dtype=jnp.float32)
    V = jax.random.normal(kv, (B, H, S, D), dtype=jnp.float32)
    E = 0.02 * jax.random.normal(ke, (H, P, S), dtype=jnp.float32)
    Fp = 0.02 * jax.random.normal(kf, (H, P, S), dtype=jnp.float32)
    lens = jnp.array([96, 80])
    mask = (jnp.arange(S)[None, :] < lens[:, None]).astype(jnp.float32)

    out = jax.block_until_ready(
        linformer_attention(Q, K, V, E, Fp, key_padding_mask=mask, tq=32))
    ref = jax.block_until_ready(
        _reference(Q, K, V, E, Fp, key_padding_mask=mask))
    np.testing.assert_allclose(np.asarray(out), np.asarray(ref),
                               atol=2e-3, rtol=2e-3)

    # --- test 3: bf16 inputs (native bf16 MXU path), S=128, tq=64 ---
    Qb, Kb, Vb = (x.astype(jnp.bfloat16) for x in (Q, K, V))
    Eb, Fb = E.astype(jnp.bfloat16), Fp.astype(jnp.bfloat16)
    outb = jax.block_until_ready(linformer_attention(Qb, Kb, Vb, Eb, Fb, tq=64))
    refb = jax.block_until_ready(_reference(Qb, Kb, Vb, Eb, Fb))
    np.testing.assert_allclose(np.asarray(outb).astype(np.float32),
                               np.asarray(refb), atol=5e-2, rtol=5e-2)

    print("KERNEL_OK")
</pallas_src>

<mosaic_0001>
module attributes {stable_mosaic.version = 11 : i64} {
  func.func @kernel(%arg0: i32, %arg1: i32, %arg2: i32, %arg3: memref<1x256x64xf32, #tpu.memory_space<vmem>>, %arg4: memref<1x256x64xf32, #tpu.memory_space<vmem>>, %arg5: memref<1x1x64x32xf32, #tpu.memory_space<vmem>>, %arg6: memref<1x1x64x32xf32, #tpu.memory_space<vmem>>, %arg7: memref<1x1x64x32xf32, #tpu.memory_space<vmem>>, %arg8: memref<1x1x64x32xf32, #tpu.memory_space<vmem>>, %arg9: memref<256x32xf32, #tpu.memory_space<vmem>>, %arg10: memref<256x32xf32, #tpu.memory_space<vmem>>) attributes {dimension_semantics = [#tpu.dimension_semantics<parallel>, #tpu.dimension_semantics<parallel>, #tpu.dimension_semantics<arbitrary>], iteration_bounds = array<i64: 2, 2, 1>, scalar_prefetch = 0 : i64, scratch_operands = 2 : i64, tpu.core_type = #tpu.core_type<tc>, window_params = [{transform_indices = @transform_0, window_bounds = array<i64: 1, 256, 64>}, {transform_indices = @transform_1, window_bounds = array<i64: 1, 256, 64>}, {transform_indices = @transform_2, window_bounds = array<i64: 1, 1, 64, 32>}, {transform_indices = @transform_3, window_bounds = array<i64: 1, 1, 64, 32>}, {transform_indices = @transform_4, window_bounds = array<i64: 1, 1, 64, 32>}, {transform_indices = @transform_5, window_bounds = array<i64: 1, 1, 64, 32>}]} {
    %c0_i32 = arith.constant 0 : i32
    %0 = arith.cmpi eq, %arg2, %c0_i32 : i32
    %1 = arith.extui %0 : i1 to i32
    %c0_i32_0 = arith.constant 0 : i32
    %2 = arith.cmpi ne, %1, %c0_i32_0 : i32
    scf.if %2 {
      %c0_16 = arith.constant 0 : index
      %c0_17 = arith.constant 0 : index
      %c0_18 = arith.constant 0 : index
      %c0_19 = arith.constant 0 : index
      %24 = vector.load %arg6[%c0_16, %c0_17, %c0_18, %c0_19] : memref<1x1x64x32xf32, #tpu.memory_space<vmem>>, vector<1x1x64x32xf32>
      %25 = vector.shape_cast %24 : vector<1x1x64x32xf32> to vector<64x32xf32>
      %c0_20 = arith.constant 0 : index
      %c0_21 = arith.constant 0 : index
      %c0_22 = arith.constant 0 : index
      %c0_23 = arith.constant 0 : index
      %26 = vector.load %arg7[%c0_20, %c0_21, %c0_22, %c0_23] : memref<1x1x64x32xf32, #tpu.memory_space<vmem>>, vector<1x1x64x32xf32>
      %27 = vector.shape_cast %26 : vector<1x1x64x32xf32> to vector<64x32xf32>
      %c0_24 = arith.constant 0 : index
      %c0_25 = arith.constant 0 : index
      %c0_26 = arith.constant 0 : index
      %28 = vector.load %arg3[%c0_24, %c0_25, %c0_26] : memref<1x256x64xf32, #tpu.memory_space<vmem>>, vector<1x256x64xf32>
      %29 = vector.shape_cast %28 : vector<1x256x64xf32> to vector<256x64xf32>
      %cst_27 = arith.constant dense<0.000000e+00> : vector<256x32xf32>
      %30 = tpu.matmul %29, %25, %cst_27 {dimension_numbers = #tpu.dot_dimension_numbers<[1], [0], [0], [1], [0, 0, 1, 1], [], []>} : vector<256x64xf32>, vector<64x32xf32>, vector<256x32xf32> -> vector<256x32xf32>
      %c0_28 = arith.constant 0 : index
      %c0_29 = arith.constant 0 : index
      %31 = vector.load %arg9[%c0_28, %c0_29] : memref<256x32xf32, #tpu.memory_space<vmem>>, vector<256x32xf32>
      tpu.vector_store %arg9[%c0_28, %c0_29], %30 {strides = array<i32>} : memref<256x32xf32, #tpu.memory_space<vmem>>, vector<256x32xf32>,
      %c0_30 = arith.constant 0 : index
      %c0_31 = arith.constant 0 : index
      %c0_32 = arith.constant 0 : index
      %32 = vector.load %arg4[%c0_30, %c0_31, %c0_32] : memref<1x256x64xf32, #tpu.memory_space<vmem>>, vector<1x256x64xf32>
      %33 = vector.shape_cast %32 : vector<1x256x64xf32> to vector<256x64xf32>
      %cst_33 = arith.constant dense<0.000000e+00> : vector<256x32xf32>
      %34 = tpu.matmul %33, %27, %cst_33 {dimension_numbers = #tpu.dot_dimension_numbers<[1], [0], [0], [1], [0, 0, 1, 1], [], []>} : vector<256x64xf32>, vector<64x32xf32>, vector<256x32xf32> -> vector<256x32xf32>
      %c0_34 = arith.constant 0 : index
      %c0_35 = arith.constant 0 : index
      %35 = vector.load %arg10[%c0_34, %c0_35] : memref<256x32xf32, #tpu.memory_space<vmem>>, vector<256x32xf32>
      tpu.vector_store %arg10[%c0_34, %c0_35], %34 {strides = array<i32>} : memref<256x32xf32, #tpu.memory_space<vmem>>, vector<256x32xf32>,
    } else {
    }
    %c0 = arith.constant 0 : index
    %c0_1 = arith.constant 0 : index
    %c0_2 = arith.constant 0 : index
    %c0_3 = arith.constant 0 : index
    %3 = vector.load %arg5[%c0, %c0_1, %c0_2, %c0_3] : memref<1x1x64x32xf32, #tpu.memory_space<vmem>>, vector<1x1x64x32xf32>
    %4 = vector.shape_cast %3 : vector<1x1x64x32xf32> to vector<64x32xf32>
    %cst = arith.constant 0.176776692 : f32
    %5 = vector.broadcast %cst : f32 to vector<64x32xf32>
    %6 = arith.mulf %4, %5 : vector<64x32xf32>
    %c0_4 = arith.constant 0 : index
    %c0_5 = arith.constant 0 : index
    %7 = vector.load %arg9[%c0_4, %c0_5] : memref<256x32xf32, #tpu.memory_space<vmem>>, vector<256x32xf32>
    %cst_6 = arith.constant dense<0.000000e+00> : vector<64x256xf32>
    %8 = tpu.matmul %6, %7, %cst_6 {dimension_numbers = #tpu.dot_dimension_numbers<[1], [1], [0], [0], [0, 0, 1, 0], [], []>} : vector<64x32xf32>, vector<256x32xf32>, vector<64x256xf32> -> vector<64x256xf32>
    %cst_7 = arith.constant dense<0xFF800000> : vector<64xf32>
    %9 = vector.multi_reduction <maximumf>, %8, %cst_7 [1] : vector<64x256xf32> to vector<64xf32>
    %10 = vector.shape_cast %9 : vector<64xf32> to vector<64x1xf32>
    %11 = vector.broadcast %10 : vector<64x1xf32> to vector<64x256xf32>
    %12 = arith.subf %8, %11 : vector<64x256xf32>
    %13 = math.exp %12 : vector<64x256xf32>
    %cst_8 = arith.constant dense<0.000000e+00> : vector<64xf32>
    %14 = vector.multi_reduction <add>, %13, %cst_8 [1] : vector<64x256xf32> to vector<64xf32>
    %15 = vector.shape_cast %14 : vector<64xf32> to vector<64x1xf32>
    %c0_9 = arith.constant 0 : index
    %c0_10 = arith.constant 0 : index
    %16 = vector.load %arg10[%c0_9, %c0_10] : memref<256x32xf32, #tpu.memory_space<vmem>>, vector<256x32xf32>
    %cst_11 = arith.constant dense<0.000000e+00> : vector<64x32xf32>
    %17 = tpu.matmul %13, %16, %cst_11 {dimension_numbers = #tpu.dot_dimension_numbers<[1], [0], [0], [1], [0, 0, 1, 1], [], []>} : vector<64x256xf32>, vector<256x32xf32>, vector<64x32xf32> -> vector<64x32xf32>
    %18 = tpu.reciprocal %15 {approx = true} : vector<64x1xf32> -> vector<64x1xf32>
    %19 = vector.broadcast %18 : vector<64x1xf32> to vector<64x32xf32>
    %20 = arith.mulf %17, %19 : vector<64x32xf32>
    %c0_12 = arith.constant 0 : index
    %c0_13 = arith.constant 0 : index
    %c0_14 = arith.constant 0 : index
    %c0_15 = arith.constant 0 : index
    %21 = vector.load %arg8[%c0_12, %c0_13, %c0_14, %c0_15] : memref<1x1x64x32xf32, #tpu.memory_space<vmem>>, vector<1x1x64x32xf32>
    %22 = vector.shape_cast %21 : vector<1x1x64x32xf32> to vector<64x32xf32>
    %23 = vector.shape_cast %20 : vector<64x32xf32> to vector<1x1x64x32xf32>
    tpu.vector_store %arg8[%c0_12, %c0_13, %c0_14, %c0_15], %23 {strides = array<i32>} : memref<1x1x64x32xf32, #tpu.memory_space<vmem>>, vector<1x1x64x32xf32>,
    return
  }
  func.func @transform_0(%arg0: i32, %arg1: i32, %arg2: i32) -> (i32, i32, i32) {
    %c0_i32 = arith.constant 0 : i32
    %c0_i32_0 = arith.constant 0 : i32
    %c0_i32_1 = arith.constant 0 : i32
    return %arg0, %c0_i32, %c0_i32_0 : i32, i32, i32
  }
  func.func @transform_1(%arg0: i32, %arg1: i32, %arg2: i32) -> (i32, i32, i32) {
    %c0_i32 = arith.constant 0 : i32
    %c0_i32_0 = arith.constant 0 : i32
    %c0_i32_1 = arith.constant 0 : i32
    return %arg0, %c0_i32, %c0_i32_0 : i32, i32, i32
  }
  func.func @transform_2(%arg0: i32, %arg1: i32, %arg2: i32) -> (i32, i32, i32, i32) {
    %c0_i32 = arith.constant 0 : i32
    %c0_i32_0 = arith.constant 0 : i32
    return %arg1, %arg0, %arg2, %c0_i32 : i32, i32, i32, i32
  }
  func.func @transform_3(%arg0: i32, %arg1: i32, %arg2: i32) -> (i32, i32, i32, i32) {
    %c0_i32 = arith.constant 0 : i32
    %c0_i32_0 = arith.constant 0 : i32
    %c0_i32_1 = arith.constant 0 : i32
    return %arg1, %arg0, %c0_i32, %c0_i32_0 : i32, i32, i32, i32
  }
  func.func @transform_4(%arg0: i32, %arg1: i32, %arg2: i32) -> (i32, i32, i32, i32) {
    %c0_i32 = arith.constant 0 : i32
    %c0_i32_0 = arith.constant 0 : i32
    %c0_i32_1 = arith.constant 0 : i32
    return %arg1, %arg0, %c0_i32, %c0_i32_0 : i32, i32, i32, i32
  }
  func.func @transform_5(%arg0: i32, %arg1: i32, %arg2: i32) -> (i32, i32, i32, i32) {
    %c0_i32 = arith.constant 0 : i32
    %c0_i32_0 = arith.constant 0 : i32
    return %arg1, %arg0, %arg2, %c0_i32 : i32, i32, i32, i32
  }
}

</mosaic_0001>

<llo_original>
// kernel: tpu_custom_call.1
$region0: #{tpu_custom_call.1}
  #allocation0 [shape = 'u32[]', space=smem, size = 0x4, offset = 0x4, fixed_abs, tag = 'smem constant byte address 0x4 - core index']
  #allocation1 [shape = 'u32[144,128]{1,0:T(1,128)}', space=vmem, size = 0x12000, scoped, tag = 'internal scratch']
  #allocation2 [shape = 'f32[256,32]{1,0:T(8,128)}', space=vmem, size = 0x20000, scoped, tag = 'scratch operand']
  #allocation3 [shape = 'f32[256,32]{1,0:T(8,128)}', space=vmem, size = 0x20000, scoped, tag = 'scratch operand']
  %s0 = inlined_call_operand.vmem [shape: f32[2,256,64], index: 0, kind: input, shape index: {}]
  %s1 = inlined_call_operand.vmem [shape: f32[2,256,64], index: 1, kind: input, shape index: {}]
  %s2 = inlined_call_operand.vmem [shape: f32[2,2,64,32], index: 2, kind: input, shape index: {}]
  %s3 = inlined_call_operand.vmem [shape: f32[2,2,64,32], index: 3, kind: input, shape index: {}]
  %s4 = inlined_call_operand.vmem [shape: f32[2,2,64,32], index: 4, kind: input, shape index: {}]
  %s5 = inlined_call_operand.vmem [shape: f32[2,2,64,32], index: 5, kind: output, shape index: {}]
  %s6 = sld [smem:[#allocation0]]
  $region57: #{tpu_custom_call.1} parent=0
    _
  %s8 = ssub.s32 1, %s6
  %s9 = scalar_select 0, %s8, %s6
  loop: start=0, step=1, limit=6
  $region2: #{tpu_custom_call.1} parent=0 // loop_pre_header
    _
  $region3: #{tpu_custom_call.1} parent=0 // loop_header
    %s11 = sphi 0, %s15
    %p12 = scmp.ge.s32.totalorder %s11, 6
    %s18 = sphi 0, %s37
    %s19 = sphi 0, %s33
    %s20 = sphi 0, %s29
    %s21 = sphi 0, %s18
    %s22 = sphi 0, %s19
    %s23 = sphi 0, %s20
    %s24 = sphi 0, %s21
    %s25 = sphi 0, %s22
    %s26 = sphi 0, %s23
    %s40 = sphi 0, %s42
    %s43 = sphi 0, %s40
    %s44 = sphi 0, %s43
    %s60 = sphi 0, %s44
    %s66 = sphi 0, %s68
    %s69 = sphi 0, %s66
    %s70 = sphi 0, %s69
    %s86 = sphi 0, %s70
    %s96 = sphi 0, %s98
    %s99 = sphi 0, %s96
    %s100 = sphi 0, %s99
    %s116 = sphi 0, %s100
    %s124 = sphi 0, %s126
    %s127 = sphi 0, %s124
    %s128 = sphi 0, %s127
    %s144 = sphi 0, %s128
    %s152 = sphi 0, %s154
    %s155 = sphi 0, %s152
    %s156 = sphi 0, %s155
    %s172 = sphi 0, %s156
    %s182 = sphi 0, %s184
    %s185 = sphi 0, %s182
    %s186 = sphi 0, %s185
    %s202 = sphi 0, %s186
  $region4: #{tpu_custom_call.1} parent=0 // loop_header_branch
    %14 = sbr.rel (%p12) target = $region8
  $region5: #{tpu_custom_call.1} parent=0 // loop_body
    %s16 = ssub.s32 %s11, 1
    %s17 = ssub.s32 %s11, 2
    %s27 = sadd.s32 1, %s20
    %p28 = scmp.ge.s32.totalorder %s27, 1
    %s29 = scalar_select %p28, 0, %s27
    %s30 = sadd.s32 1, %s19
    %s31 = scalar_select %p28, %s30, %s19
    %p32 = scmp.ge.s32.totalorder %s31, 2
    %s33 = scalar_select %p32, 0, %s31
    %s34 = sadd.s32 1, %s18
    %s35 = scalar_select %p32, %s34, %s18
    %p36 = scmp.ge.s32.totalorder %s35, 2
    %s37 = scalar_select %p36, 0, %s35
    %s38 = ssub.s32 %s18, %s37
    %p39 = scmp.eq.s32.totalorder %s38, 0
    %s41 = sadd.s32 %s40, 1
    %s42 = scalar_select %p39, %s40, %s41
    %p45 = pneg %p39
    %p46 = scmp.eq.s32.totalorder %s11, 3
    %p47 = por %p45, %p46
    %p48 = scmp.ne.s32.totalorder %s40, %s43
    %p49 = scmp.eq.s32.totalorder %s11, 0
    %p50 = por %p48, %p49
    %p51 = scmp.ne.s32.totalorder %s40, %s43
    %p52 = scmp.eq.s32.totalorder %s16, 3
    %p53 = por %p51, %p52
    %p54 = scmp.ne.s32.totalorder %s43, %s44
    %p55 = scmp.eq.s32.totalorder %s16, 0
    %p56 = por %p54, %p55
    %p57 = scmp.ne.s32.totalorder %s43, %s44
    %p58 = scmp.eq.s32.totalorder %s17, 3
    %p59 = por %p57, %p58
    %p61 = scmp.ne.s32.totalorder %s44, %s60
    %p62 = scmp.eq.s32.totalorder %s17, 0
    %p63 = por %p61, %p62
    %s64 = ssub.s32 %s18, %s37
    %p65 = scmp.eq.s32.totalorder %s64, 0
    %s67 = sadd.s32 %s66, 1
    %s68 = scalar_select %p65, %s66, %s67
    %p71 = pneg %p65
    %p72 = scmp.eq.s32.totalorder %s11, 3
    %p73 = por %p71, %p72
    %p74 = scmp.ne.s32.totalorder %s66, %s69
    %p75 = scmp.eq.s32.totalorder %s11, 0
    %p76 = por %p74, %p75
    %p77 = scmp.ne.s32.totalorder %s66, %s69
    %p78 = scmp.eq.s32.totalorder %s16, 3
    %p79 = por %p77, %p78
    %p80 = scmp.ne.s32.totalorder %s69, %s70
    %p81 = scmp.eq.s32.totalorder %s16, 0
    %p82 = por %p80, %p81
    %p83 = scmp.ne.s32.totalorder %s69, %s70
    %p84 = scmp.eq.s32.totalorder %s17, 3
    %p85 = por %p83, %p84
    %p87 = scmp.ne.s32.totalorder %s70, %s86
    %p88 = scmp.eq.s32.totalorder %s17, 0
    %p89 = por %p87, %p88
    %s90 = ssub.s32 %s19, %s33
    %s91 = ssub.s32 %s18, %s37
    %s92 = sor.u32 %s90, %s91
    %s93 = ssub.s32 %s20, %s29
    %s94 = sor.u32 %s92, %s93
    %p95 = scmp.eq.s32.totalorder %s94, 0
    %s97 = sadd.s32 %s96, 1
    %s98 = scalar_select %p95, %s96, %s97
    %p101 = pneg %p95
    %p102 = scmp.eq.s32.totalorder %s11, 3
    %p103 = por %p101, %p102
    %p104 = scmp.ne.s32.totalorder %s96, %s99
    %p105 = scmp.eq.s32.totalorder %s11, 0
    %p106 = por %p104, %p105
    %p107 = scmp.ne.s32.totalorder %s96, %s99
    %p108 = scmp.eq.s32.totalorder %s16, 3
    %p109 = por %p107, %p108
    %p110 = scmp.ne.s32.totalorder %s99, %s100
    %p111 = scmp.eq.s32.totalorder %s16, 0
    %p112 = por %p110, %p111
    %p113 = scmp.ne.s32.totalorder %s99, %s100
    %p114 = scmp.eq.s32.totalorder %s17, 3
    %p115 = por %p113, %p114
    %p117 = scmp.ne.s32.totalorder %s100, %s116
    %p118 = scmp.eq.s32.totalorder %s17, 0
    %p119 = por %p117, %p118
    %s120 = ssub.s32 %s19, %s33
    %s121 = ssub.s32 %s18, %s37
    %s122 = sor.u32 %s120, %s121
    %p123 = scmp.eq.s32.totalorder %s122, 0
    %s125 = sadd.s32 %s124, 1
    %s126 = scalar_select %p123, %s124, %s125
    %p129 = pneg %p123
    %p130 = scmp.eq.s32.totalorder %s11, 3
    %p131 = por %p129, %p130
    %p132 = scmp.ne.s32.totalorder %s124, %s127
    %p133 = scmp.eq.s32.totalorder %s11, 0
    %p134 = por %p132, %p133
    %p135 = scmp.ne.s32.totalorder %s124, %s127
    %p136 = scmp.eq.s32.totalorder %s16, 3
    %p137 = por %p135, %p136
    %p138 = scmp.ne.s32.totalorder %s127, %s128
    %p139 = scmp.eq.s32.totalorder %s16, 0
    %p140 = por %p138, %p139
    %p141 = scmp.ne.s32.totalorder %s127, %s128
    %p142 = scmp.eq.s32.totalorder %s17, 3
    %p143 = por %p141, %p142
    %p145 = scmp.ne.s32.totalorder %s128, %s144
    %p146 = scmp.eq.s32.totalorder %s17, 0
    %p147 = por %p145, %p146
    %s148 = ssub.s32 %s19, %s33
    %s149 = ssub.s32 %s18, %s37
    %s150 = sor.u32 %s148, %s149
    %p151 = scmp.eq.s32.totalorder %s150, 0
    %s153 = sadd.s32 %s152, 1
    %s154 = scalar_select %p151, %s152, %s153
    %p157 = pneg %p151
    %p158 = scmp.eq.s32.totalorder %s11, 3
    %p159 = por %p157, %p158
    %p160 = scmp.ne.s32.totalorder %s152, %s155
    %p161 = scmp.eq.s32.totalorder %s11, 0
    %p162 = por %p160, %p161
    %p163 = scmp.ne.s32.totalorder %s152, %s155
    %p164 = scmp.eq.s32.totalorder %s16, 3
    %p165 = por %p163, %p164
    %p166 = scmp.ne.s32.totalorder %s155, %s156
    %p167 = scmp.eq.s32.totalorder %s16, 0
    %p168 = por %p166, %p167
    %p169 = scmp.ne.s32.totalorder %s155, %s156
    %p170 = scmp.eq.s32.totalorder %s17, 3
    %p171 = por %p169, %p170
    %p173 = scmp.ne.s32.totalorder %s156, %s172
    %p174 = scmp.eq.s32.totalorder %s17, 0
    %p175 = por %p173, %p174
    %s176 = ssub.s32 %s19, %s33
    %s177 = ssub.s32 %s18, %s37
    %s178 = sor.u32 %s176, %s177
    %s179 = ssub.s32 %s20, %s29
    %s180 = sor.u32 %s178, %s179
    %p181 = scmp.eq.s32.totalorder %s180, 0
    %s183 = sadd.s32 %s182, 1
    %s184 = scalar_select %p181, %s182, %s183
    %p187 = pneg %p181
    %p188 = scmp.eq.s32.totalorder %s11, 3
    %p189 = por %p187, %p188
    %p190 = scmp.ne.s32.totalorder %s182, %s185
    %p191 = scmp.eq.s32.totalorder %s11, 0
    %p192 = por %p190, %p191
    %p193 = scmp.ne.s32.totalorder %s182, %s185
    %p194 = scmp.eq.s32.totalorder %s16, 3
    %p195 = por %p193, %p194
    %p196 = scmp.ne.s32.totalorder %s185, %s186
    %p197 = scmp.eq.s32.totalorder %s16, 0
    %p198 = por %p196, %p197
    %p199 = scmp.ne.s32.totalorder %s185, %s186
    %p200 = scmp.eq.s32.totalorder %s17, 3
    %p201 = por %p199, %p200
    %p203 = scmp.ne.s32.totalorder %s186, %s202
    %p204 = scmp.eq.s32.totalorder %s17, 0
    %p205 = por %p203, %p204
    %p206 = scmp.le.s32.totalorder 1, %s11
    %p207 = scmp.lt.s32.totalorder %s11, 5
    %p208 = pnand %p206, %p207
    %p209 = pneg %p208
    // Predicated region
    $region9: #{tpu_custom_call.1} parent=5 // pred_check
      _
    $region10: #{tpu_custom_call.1} parent=5 // pred_check_branch
      %211 = sbr.rel (%p208) target = $region12
    $region11: #{tpu_custom_call.1} parent=5 // pred_region
      %s212 = ssub.s32 %s11, 1
    $region12: #{tpu_custom_call.1} parent=5 // pred_fallthru
      _
    %p213 = scmp.lt.s32.totalorder %s11, 4
    // Predicated region
    $region13: #{tpu_custom_call.1} parent=5 // pred_check
      %p214 = pneg %p213
    $region14: #{tpu_custom_call.1} parent=5 // pred_check_branch
      %216 = sbr.rel (%p214) target = $region16
    $region15: #{tpu_custom_call.1} parent=5 // pred_region
      // Predicated region
      $region17: #{tpu_custom_call.1} parent=15 // pred_check
        %p217 = pneg %p50
      $region18: #{tpu_custom_call.1} parent=15 // pred_check_branch
        %219 = sbr.rel (%p217) target = $region20
      $region19: #{tpu_custom_call.1} parent=15 // pred_region
        %p220 = scmp.lt.s32.totalorder %s18, 1
        %s221 = scalar_select %p220, %s18, 1
        %s222 = smul.addr %s221, 32
        %s223 = smul.addr %s222, 8
        %s224 = scalar_lea.vmem %s0, %s223
      $region20: #{tpu_custom_call.1} parent=15 // pred_fallthru
        _
      // Predicated region
      $region21: #{tpu_custom_call.1} parent=15 // pred_check
        %p225 = pneg %p76
      $region22: #{tpu_custom_call.1} parent=15 // pred_check_branch
        %227 = sbr.rel (%p225) target = $region24
      $region23: #{tpu_custom_call.1} parent=15 // pred_region
        %p228 = scmp.lt.s32.totalorder %s18, 1
        %s229 = scalar_select %p228, %s18, 1
        %s230 = smul.addr %s229, 32
        %s231 = smul.addr %s230, 8
        %s232 = scalar_lea.vmem %s1, %s231
      $region24: #{tpu_custom_call.1} parent=15 // pred_fallthru
        _
      // Predicated region
      $region25: #{tpu_custom_call.1} parent=15 // pred_check
        %p233 = pneg %p106
      $region26: #{tpu_custom_call.1} parent=15 // pred_check_branch
        %235 = sbr.rel (%p233) target = $region28
      $region27: #{tpu_custom_call.1} parent=15 // pred_region
        %s236 = smul.u32 8, %s20
        %p237 = scmp.lt.s32.totalorder %s19, 1
        %s238 = scalar_select %p237, %s19, 1
        %p239 = scmp.lt.s32.totalorder %s18, 1
        %s240 = scalar_select %p239, %s18, 1
        %p241 = scmp.lt.s32.totalorder %s236, 7
        %s242 = scalar_select %p241, %s236, 7
        %s243 = smul.addr %s240, 8
        %s244 = sadd.s32 %s242, %s243
        %s245 = smul.addr %s238, 16
        %s246 = sadd.s32 %s244, %s245
        %s247 = smul.addr %s246, 8
        %s248 = scalar_lea.vmem %s2, %s247
        %s249 = smul.u32 8, %s20
      $region28: #{tpu_custom_call.1} parent=15 // pred_fallthru
        _
      // Predicated region
      $region29: #{tpu_custom_call.1} parent=15 // pred_check
        %p250 = pneg %p134
      $region30: #{tpu_custom_call.1} parent=15 // pred_check_branch
        %252 = sbr.rel (%p250) target = $region32
      $region31: #{tpu_custom_call.1} parent=15 // pred_region
        %p253 = scmp.lt.s32.totalorder %s19, 1
        %s254 = scalar_select %p253, %s19, 1
        %p255 = scmp.lt.s32.totalorder %s18, 1
        %s256 = scalar_select %p255, %s18, 1
        %s257 = smul.addr %s256, 8
        %s258 = smul.addr %s254, 16
        %s259 = sadd.s32 %s257, %s258
        %s260 = smul.addr %s259, 8
        %s261 = scalar_lea.vmem %s3, %s260
      $region32: #{tpu_custom_call.1} parent=15 // pred_fallthru
        _
      // Predicated region
      $region33: #{tpu_custom_call.1} parent=15 // pred_check
        %p262 = pneg %p162
      $region34: #{tpu_custom_call.1} parent=15 // pred_check_branch
        %264 = sbr.rel (%p262) target = $region36
      $region35: #{tpu_custom_call.1} parent=15 // pred_region
        %p265 = scmp.lt.s32.totalorder %s19, 1
        %s266 = scalar_select %p265, %s19, 1
        %p267 = scmp.lt.s32.totalorder %s18, 1
        %s268 = scalar_select %p267, %s18, 1
        %s269 = smul.addr %s268, 8
        %s270 = smul.addr %s266, 16
        %s271 = sadd.s32 %s269, %s270
        %s272 = smul.addr %s271, 8
        %s273 = scalar_lea.vmem %s4, %s272
      $region36: #{tpu_custom_call.1} parent=15 // pred_fallthru
        _
    $region16: #{tpu_custom_call.1} parent=5 // pred_fallthru
      _
    %p274 = scmp.le.s32.totalorder 1, %s11
    %p275 = scmp.lt.s32.totalorder %s11, 5
    %p276 = pnand %p274, %p275
    %p277 = pneg %p276
    // Predicated region
    $region37: #{tpu_custom_call.1} parent=5 // pred_check
      _
    $region38: #{tpu_custom_call.1} parent=5 // pred_check_branch
      %279 = sbr.rel (%p276) target = $region40
    $region39: #{tpu_custom_call.1} parent=5 // pred_region
      %s280 = ssub.s32 %s11, 1
      %p281 = scmp.lt.s32.totalorder %s21, 1
      %s282 = scalar_select %p281, %s21, 1
      %s283 = smul.addr %s282, 32
      %s284 = smul.addr %s283, 8
      %s285 = scalar_lea.vmem %s0, %s284
      %p286 = pneg %p56
      %p287 = pneg %p53
      %p288 = scmp.lt.s32.totalorder %s21, 1
      %s289 = scalar_select %p288, %s21, 1
      %s290 = smul.addr %s289, 32
      %s291 = smul.addr %s290, 8
      %s292 = scalar_lea.vmem %s1, %s291
      %p293 = pneg %p82
      %p294 = pneg %p79
      %s295 = smul.u32 8, %s23
      %p296 = scmp.lt.s32.totalorder %s22, 1
      %s297 = scalar_select %p296, %s22, 1
      %p298 = scmp.lt.s32.totalorder %s21, 1
      %s299 = scalar_select %p298, %s21, 1
      %p300 = scmp.lt.s32.totalorder %s295, 7
      %s301 = scalar_select %p300, %s295, 7
      %s302 = smul.addr %s299, 8
      %s303 = sadd.s32 %s301, %s302
      %s304 = smul.addr %s297, 16
      %s305 = sadd.s32 %s303, %s304
      %s306 = smul.addr %s305, 8
      %s307 = scalar_lea.vmem %s2, %s306
      %p308 = pneg %p112
      %p309 = pneg %p109
      %p310 = scmp.lt.s32.totalorder %s22, 1
      %s311 = scalar_select %p310, %s22, 1
      %p312 = scmp.lt.s32.totalorder %s21, 1
      %s313 = scalar_select %p312, %s21, 1
      %s314 = smul.addr %s313, 8
      %s315 = smul.addr %s311, 16
      %s316 = sadd.s32 %s314, %s315
      %s317 = smul.addr %s316, 8
      %s318 = scalar_lea.vmem %s3, %s317
      %p319 = pneg %p140
      %p320 = pneg %p137
      %p321 = scmp.lt.s32.totalorder %s22, 1
      %s322 = scalar_select %p321, %s22, 1
      %p323 = scmp.lt.s32.totalorder %s21, 1
      %s324 = scalar_select %p323, %s21, 1
      %s325 = smul.addr %s324, 8
      %s326 = smul.addr %s322, 16
      %s327 = sadd.s32 %s325, %s326
      %s328 = smul.addr %s327, 8
      %s329 = scalar_lea.vmem %s4, %s328
      %p330 = pneg %p168
      %p331 = pneg %p165
      %p332 = pneg %p198
      %p333 = pneg %p195
      %s334 = smul.u32 8, %s23
      %p335 = scmp.lt.s32.totalorder %s22, 1
      %s336 = scalar_select %p335, %s22, 1
      %p337 = scmp.lt.s32.totalorder %s21, 1
      %s338 = scalar_select %p337, %s21, 1
      %p339 = scmp.lt.s32.totalorder %s334, 7
      %s340 = scalar_select %p339, %s334, 7
      %s341 = smul.addr %s338, 8
      %s342 = sadd.s32 %s340, %s341
      %s343 = smul.addr %s336, 16
      %s344 = sadd.s32 %s342, %s343
      %s345 = smul.addr %s344, 8
      %s346 = scalar_lea.vmem %s5, %s345
      %p347 = scmp.lt.s32.totalorder %s21, 1
      %s348 = scalar_select %p347, %s21, 1
      %s349 = smul.addr %s348, 32
      %s350 = smul.addr %s349, 8
      %s351 = scalar_lea.vmem %s0, %s350
      %p352 = scmp.lt.s32.totalorder %s21, 1
      %s353 = scalar_select %p352, %s21, 1
      %s354 = smul.addr %s353, 32
      %s355 = smul.addr %s354, 8
      %s356 = scalar_lea.vmem %s1, %s355
      %s357 = smul.u32 8, %s23
      %p358 = scmp.lt.s32.totalorder %s22, 1
      %s359 = scalar_select %p358, %s22, 1
      %p360 = scmp.lt.s32.totalorder %s21, 1
      %s361 = scalar_select %p360, %s21, 1
      %p362 = scmp.lt.s32.totalorder %s357, 7
      %s363 = scalar_select %p362, %s357, 7
      %s364 = smul.addr %s361, 8
      %s365 = sadd.s32 %s363, %s364
      %s366 = smul.addr %s359, 16
      %s367 = sadd.s32 %s365, %s366
      %s368 = smul.addr %s367, 8
      %s369 = scalar_lea.vmem %s2, %s368
      %s370 = smul.u32 8, %s23
      %p371 = scmp.lt.s32.totalorder %s22, 1
      %s372 = scalar_select %p371, %s22, 1
      %p373 = scmp.lt.s32.totalorder %s21, 1
      %s374 = scalar_select %p373, %s21, 1
      %s375 = smul.addr %s374, 8
      %s376 = smul.addr %s372, 16
      %s377 = sadd.s32 %s375, %s376
      %s378 = smul.addr %s377, 8
      %s379 = scalar_lea.vmem %s3, %s378
      %p380 = scmp.lt.s32.totalorder %s22, 1
      %s381 = scalar_select %p380, %s22, 1
      %p382 = scmp.lt.s32.totalorder %s21, 1
      %s383 = scalar_select %p382, %s21, 1
      %s384 = smul.addr %s383, 8
      %s385 = smul.addr %s381, 16
      %s386 = sadd.s32 %s384, %s385
      %s387 = smul.addr %s386, 8
      %s388 = scalar_lea.vmem %s4, %s387
      %s389 = smul.u32 8, %s23
      %p390 = scmp.lt.s32.totalorder %s22, 1
      %s391 = scalar_select %p390, %s22, 1
      %p392 = scmp.lt.s32.totalorder %s21, 1
      %s393 = scalar_select %p392, %s21, 1
      %p394 = scmp.lt.s32.totalorder %s389, 7
      %s395 = scalar_select %p394, %s389, 7
      %s396 = smul.addr %s393, 8
      %s397 = sadd.s32 %s395, %s396
      %s398 = smul.addr %s391, 16
      %s399 = sadd.s32 %s397, %s398
      %s400 = smul.addr %s399, 8
      %s401 = scalar_lea.vmem %s5, %s400
      %s402 = smul.u32 8, %s23
      %p403 = scmp.eq.s32.totalorder %s23, 0
      // Predicated region
      $region41: #{tpu_custom_call.1} parent=39 // pred_check
        %p404 = pneg %p403
      $region42: #{tpu_custom_call.1} parent=39 // pred_check_branch
        %406 = sbr.rel (%p404) target = $region44
      $region43: #{tpu_custom_call.1} parent=39 // pred_region
        %v407 = vld [vmem:[%s379] sm:$0xff]
        %v408 = vld [vmem:[%s379 + $0x8] sm:$0xff]
        %v409 = vld [vmem:[%s379 + $0x10] sm:$0xff]
        %v410 = vld [vmem:[%s379 + $0x18] sm:$0xff]
        %v411 = vld [vmem:[%s379 + $0x20] sm:$0xff]
        %v412 = vld [vmem:[%s379 + $0x28] sm:$0xff]
        %v413 = vld [vmem:[%s379 + $0x30] sm:$0xff]
        %v414 = vld [vmem:[%s379 + $0x38] sm:$0xff]
        %v415 = vld [vmem:[%s388] sm:$0xff]
        %v416 = vld [vmem:[%s388 + $0x8] sm:$0xff]
        %v417 = vld [vmem:[%s388 + $0x10] sm:$0xff]
        %v418 = vld [vmem:[%s388 + $0x18] sm:$0xff]
        %v419 = vld [vmem:[%s388 + $0x20] sm:$0xff]
        %v420 = vld [vmem:[%s388 + $0x28] sm:$0xff]
        %v421 = vld [vmem:[%s388 + $0x30] sm:$0xff]
        %v422 = vld [vmem:[%s388 + $0x38] sm:$0xff]
        %v423 = vld [vmem:[%s351] sm:$0xff]
        %v424 = vld [vmem:[%s351 + $0x8] sm:$0xff]
        %v425 = vld [vmem:[%s351 + $0x10] sm:$0xff]
        %v426 = vld [vmem:[%s351 + $0x18] sm:$0xff]
        %v427 = vld [vmem:[%s351 + $0x20] sm:$0xff]
        %v428 = vld [vmem:[%s351 + $0x28] sm:$0xff]
        %v429 = vld [vmem:[%s351 + $0x30] sm:$0xff]
        %v430 = vld [vmem:[%s351 + $0x38] sm:$0xff]
        %v431 = vld [vmem:[%s351 + $0x40] sm:$0xff]
        %v432 = vld [vmem:[%s351 + $0x48] sm:$0xff]
        %v433 = vld [vmem:[%s351 + $0x50] sm:$0xff]
        %v434 = vld [vmem:[%s351 + $0x58] sm:$0xff]
        %v435 = vld [vmem:[%s351 + $0x60] sm:$0xff]
        %v436 = vld [vmem:[%s351 + $0x68] sm:$0xff]
        %v437 = vld [vmem:[%s351 + $0x70] sm:$0xff]
        %v438 = vld [vmem:[%s351 + $0x78] sm:$0xff]
        %v439 = vld [vmem:[%s351 + $0x80] sm:$0xff]
        %v440 = vld [vmem:[%s351 + $0x88] sm:$0xff]
        %v441 = vld [vmem:[%s351 + $0x90] sm:$0xff]
        %v442 = vld [vmem:[%s351 + $0x98] sm:$0xff]
        %v443 = vld [vmem:[%s351 + $0xa0] sm:$0xff]
        %v444 = vld [vmem:[%s351 + $0xa8] sm:$0xff]
        %v445 = vld [vmem:[%s351 + $0xb0] sm:$0xff]
        %v446 = vld [vmem:[%s351 + $0xb8] sm:$0xff]
        %v447 = vld [vmem:[%s351 + $0xc0] sm:$0xff]
        %v448 = vld [vmem:[%s351 + $0xc8] sm:$0xff]
        %v449 = vld [vmem:[%s351 + $0xd0] sm:$0xff]
        %v450 = vld [vmem:[%s351 + $0xd8] sm:$0xff]
        %v451 = vld [vmem:[%s351 + $0xe0] sm:$0xff]
        %v452 = vld [vmem:[%s351 + $0xe8] sm:$0xff]
        %v453 = vld [vmem:[%s351 + $0xf0] sm:$0xff]
        %v454 = vld [vmem:[%s351 + $0xf8] sm:$0xff]
        %vm455 = vcmask 523264
        %v457 = vsel %vm455, %v423, 0
        %v460 = vsel %vm455, %v424, 0
        %v463 = vsel %vm455, %v425, 0
        %v466 = vsel %vm455, %v426, 0
        %v469 = vsel %vm455, %v427, 0
        %v472 = vsel %vm455, %v428, 0
        %v475 = vsel %vm455, %v429, 0
        %v478 = vsel %vm455, %v430, 0
        %v481 = vsel %vm455, %v431, 0
        %v484 = vsel %vm455, %v432, 0
        %v487 = vsel %vm455, %v433, 0
        %v490 = vsel %vm455, %v434, 0
        %v493 = vsel %vm455, %v435, 0
        %v496 = vsel %vm455, %v436, 0
        %v499 = vsel %vm455, %v437, 0
        %v502 = vsel %vm455, %v438, 0
        %v505 = vsel %vm455, %v439, 0
        %v508 = vsel %vm455, %v440, 0
        %v511 = vsel %vm455, %v441, 0
        %v514 = vsel %vm455, %v442, 0
        %v517 = vsel %vm455, %v443, 0
        %v520 = vsel %vm455, %v444, 0
        %v523 = vsel %vm455, %v445, 0
        %v526 = vsel %vm455, %v446, 0
        %v529 = vsel %vm455, %v447, 0
        %v532 = vsel %vm455, %v448, 0
        %v535 = vsel %vm455, %v449, 0
        %v538 = vsel %vm455, %v450, 0
        %v541 = vsel %vm455, %v451, 0
        %v544 = vsel %vm455, %v452, 0
        %v547 = vsel %vm455, %v453, 0
        %v550 = vsel %vm455, %v454, 0
        %552 = vmatprep.subr.mxu0 0.0
        %553 = vmatpush1.msra.mxu0 %v407
        %554 = vmatprep.subr.mxu0 0.0
        %555 = vmatpush1.msra.mxu0 %v408
        %556 = vmatprep.subr.mxu0 0.0
        %557 = vmatpush1.msra.mxu0 %v409
        %558 = vmatprep.subr.mxu0 0.0
        %559 = vmatpush1.msra.mxu0 %v410
        %560 = vmatprep.subr.mxu0 0.0
        %561 = vmatpush1.msra.mxu0 %v411
        %562 = vmatprep.subr.mxu0 0.0
        %563 = vmatpush1.msra.mxu0 %v412
        %564 = vmatprep.subr.mxu0 0.0
        %565 = vmatpush1.msra.mxu0 %v413
        %566 = vmatprep.subr.mxu0 0.0
        %567 = vmatpush1.msra.mxu0 %v414
        %568 = vmatprep.subr.mxu0 0.0
        %569 = vmatpush1.msra.mxu0 0.0
        %570 = vmatprep.subr.mxu0 0.0
        %571 = vmatpush1.msra.mxu0 0.0
        %572 = vmatprep.subr.mxu0 0.0
        %573 = vmatpush1.msra.mxu0 0.0
        %574 = vmatprep.subr.mxu0 0.0
        %575 = vmatpush1.msra.mxu0 0.0
        %576 = vmatprep.subr.mxu0 0.0
        %577 = vmatpush1.msra.mxu0 0.0
        %578 = vmatprep.subr.mxu0 0.0
        %579 = vmatpush1.msra.mxu0 0.0
        %580 = vmatprep.subr.mxu0 0.0
        %581 = vmatpush1.msra.mxu0 0.0
        %582 = vmatprep.subr.mxu0 0.0
        %583 = vmatpush1.msra.mxu0 0.0
        %584 = vmatprep.subr.mxu0 0.0
        %585 = vmatpush1.msra.mxu0 0.0
        %586 = vmatprep.subr.mxu0 0.0
        %587 = vmatpush1.msra.mxu0 0.0
        %588 = vmatprep.subr.mxu0 0.0
        %589 = vmatpush1.msra.mxu0 0.0
        %590 = vmatprep.subr.mxu0 0.0
        %591 = vmatpush1.msra.mxu0 0.0
        %592 = vmatprep.subr.mxu0 0.0
        %593 = vmatpush1.msra.mxu0 0.0
        %594 = vmatprep.subr.mxu0 0.0
        %595 = vmatpush1.msra.mxu0 0.0
        %596 = vmatprep.subr.mxu0 0.0
        %597 = vmatpush1.msra.mxu0 0.0
        %598 = vmatprep.subr.mxu0 0.0
        %599 = vmatpush1.msra.mxu0 0.0
        %600 = vmatprep.subr.mxu0 0.0
        %601 = vmatpush1.msra.mxu0 0.0
        %602 = vmatprep.subr.mxu0 0.0
        %603 = vmatpush1.msra.mxu0 0.0
        %604 = vmatprep.subr.mxu0 0.0
        %605 = vmatpush1.msra.mxu0 0.0
        %606 = vmatprep.subr.mxu0 0.0
        %607 = vmatpush1.msra.mxu0 0.0
        %608 = vmatprep.subr.mxu0 0.0
        %609 = vmatpush1.msra.mxu0 0.0
        %610 = vmatprep.subr.mxu0 0.0
        %611 = vmatpush1.msra.mxu0 0.0
        %612 = vmatprep.subr.mxu0 0.0
        %613 = vmatpush1.msra.mxu0 0.0
        %614 = vmatprep.subr.mxu0 0.0
        %615 = vmatpush1.msra.mxu0 0.0
        %616 = vmatprep.mubr.f32.mxu0 0.0
        %617 = vmatmul.mubr.f32.gmra.mrb[0].mxu0 %v457
        %v618 = vpop.f32.mrb[0].mxu0
        %v619 = vadd.f32 0.0, %v618
        %v620 = vpop.f32.mrb[0].mxu0
        %621 = vmatprep.mubr.f32.mxu0 0.0
        %622 = vmatmul.mubr.f32.gmra.mrb[0].mxu0 %v460
        %v623 = vpop.f32.mrb[0].mxu0
        %v624 = vadd.f32 0.0, %v623
        %v625 = vpop.f32.mrb[0].mxu0
        %626 = vmatprep.mubr.f32.mxu0 0.0
        %627 = vmatmul.mubr.f32.gmra.mrb[0].mxu0 %v463
        %v628 = vpop.f32.mrb[0].mxu0
        %v629 = vadd.f32 0.0, %v628
        %v630 = vpop.f32.mrb[0].mxu0
        %631 = vmatprep.mubr.f32.mxu0 0.0
        %632 = vmatmul.mubr.f32.gmra.mrb[0].mxu0 %v466
        %v633 = vpop.f32.mrb[0].mxu0
        %v634 = vadd.f32 0.0, %v633
        %v635 = vpop.f32.mrb[0].mxu0
        %636 = vmatprep.mubr.f32.mxu0 0.0
        %637 = vmatmul.mubr.f32.gmra.mrb[0].mxu0 %v469
        %v638 = vpop.f32.mrb[0].mxu0
        %v639 = vadd.f32 0.0, %v638
        %v640 = vpop.f32.mrb[0].mxu0
        %641 = vmatprep.mubr.f32.mxu0 0.0
        %642 = vmatmul.mubr.f32.gmra.mrb[0].mxu0 %v472
        %v643 = vpop.f32.mrb[0].mxu0
        %v644 = vadd.f32 0.0, %v643
        %v645 = vpop.f32.mrb[0].mxu0
        %646 = vmatprep.mubr.f32.mxu0 0.0
        %647 = vmatmul.mubr.f32.gmra.mrb[0].mxu0 %v475
        %v648 = vpop.f32.mrb[0].mxu0
        %v649 = vadd.f32 0.0, %v648
        %v650 = vpop.f32.mrb[0].mxu0
        %651 = vmatprep.mubr.f32.mxu0 0.0
        %652 = vmatmul.mubr.f32.gmra.mrb[0].mxu0 %v478
        %v653 = vpop.f32.mrb[0].mxu0
        %v654 = vadd.f32 0.0, %v653
        %v655 = vpop.f32.mrb[0].mxu0
        %656 = vmatprep.mubr.f32.mxu0 0.0
        %657 = vmatmul.mubr.f32.gmra.mrb[0].mxu0 %v481
        %v658 = vpop.f32.mrb[0].mxu0
        %v659 = vadd.f32 0.0, %v658
        %v660 = vpop.f32.mrb[0].mxu0
        %661 = vmatprep.mubr.f32.mxu0 0.0
        %662 = vmatmul.mubr.f32.gmra.mrb[0].mxu0 %v484
        %v663 = vpop.f32.mrb[0].mxu0
        %v664 = vadd.f32 0.0, %v663
        %v665 = vpop.f32.mrb[0].mxu0
        %666 = vmatprep.mubr.f32.mxu0 0.0
        %667 = vmatmul.mubr.f32.gmra.mrb[0].mxu0 %v487
        %v668 = vpop.f32.mrb[0].mxu0
        %v669 = vadd.f32 0.0, %v668
        %v670 = vpop.f32.mrb[0].mxu0
        %671 = vmatprep.mubr.f32.mxu0 0.0
        %672 = vmatmul.mubr.f32.gmra.mrb[0].mxu0 %v490
        %v673 = vpop.f32.mrb[0].mxu0
        %v674 = vadd.f32 0.0, %v673
        %v675 = vpop.f32.mrb[0].mxu0
        %676 = vmatprep.mubr.f32.mxu0 0.0
        %677 = vmatmul.mubr.f32.gmra.mrb[0].mxu0 %v493
        %v678 = vpop.f32.mrb[0].mxu0
        %v679 = vadd.f32 0.0, %v678
        %v680 = vpop.f32.mrb[0].mxu0
        %681 = vmatprep.mubr.f32.mxu0 0.0
        %682 = vmatmul.mubr.f32.gmra.mrb[0].mxu0 %v496
        %v683 = vpop.f32.mrb[0].mxu0
        %v684 = vadd.f32 0.0, %v683
        %v685 = vpop.f32.mrb[0].mxu0
        %686 = vmatprep.mubr.f32.mxu0 0.0
        %687 = vmatmul.mubr.f32.gmra.mrb[0].mxu0 %v499
        %v688 = vpop.f32.mrb[0].mxu0
        %v689 = vadd.f32 0.0, %v688
        %v690 = vpop.f32.mrb[0].mxu0
        %691 = vmatprep.mubr.f32.mxu0 0.0
        %692 = vmatmul.mubr.f32.gmra.mrb[0].mxu0 %v502
        %v693 = vpop.f32.mrb[0].mxu0
        %v694 = vadd.f32 0.0, %v693
        %v695 = vpop.f32.mrb[0].mxu0
        %696 = vmatprep.mubr.f32.mxu0 0.0
        %697 = vmatmul.mubr.f32.gmra.mrb[0].mxu0 %v505
        %v698 = vpop.f32.mrb[0].mxu0
        %v699 = vadd.f32 0.0, %v698
        %v700 = vpop.f32.mrb[0].mxu0
        %701 = vmatprep.mubr.f32.mxu0 0.0
        %702 = vmatmul.mubr.f32.gmra.mrb[0].mxu0 %v508
        %v703 = vpop.f32.mrb[0].mxu0
        %v704 = vadd.f32 0.0, %v703
        %v705 = vpop.f32.mrb[0].mxu0
        %706 = vmatprep.mubr.f32.mxu0 0.0
        %707 = vmatmul.mubr.f32.gmra.mrb[0].mxu0 %v511
        %v708 = vpop.f32.mrb[0].mxu0
        %v709 = vadd.f32 0.0, %v708
        %v710 = vpop.f32.mrb[0].mxu0
        %711 = vmatprep.mubr.f32.mxu0 0.0
        %712 = vmatmul.mubr.f32.gmra.mrb[0].mxu0 %v514
        %v713 = vpop.f32.mrb[0].mxu0
        %v714 = vadd.f32 0.0, %v713
        %v715 = vpop.f32.mrb[0].mxu0
        %716 = vmatprep.mubr.f32.mxu0 0.0
        %717 = vmatmul.mubr.f32.gmra.mrb[0].mxu0 %v517
        %v718 = vpop.f32.mrb[0].mxu0
        %v719 = vadd.f32 0.0, %v718
        %v720 = vpop.f32.mrb[0].mxu0
        %721 = vmatprep.mubr.f32.mxu0 0.0
        %722 = vmatmul.mubr.f32.gmra.mrb[0].mxu0 %v520
        %v723 = vpop.f32.mrb[0].mxu0
        %v724 = vadd.f32 0.0, %v723
        %v725 = vpop.f32.mrb[0].mxu0
        %726 = vmatprep.mubr.f32.mxu0 0.0
        %727 = vmatmul.mubr.f32.gmra.mrb[0].mxu0 %v523
        %v728 = vpop.f32.mrb[0].mxu0
        %v729 = vadd.f32 0.0, %v728
        %v730 = vpop.f32.mrb[0].mxu0
        %731 = vmatprep.mubr.f32.mxu0 0.0
        %732 = vmatmul.mubr.f32.gmra.mrb[0].mxu0 %v526
        %v733 = vpop.f32.mrb[0].mxu0
        %v734 = vadd.f32 0.0, %v733
        %v735 = vpop.f32.mrb[0].mxu0
        %736 = vmatprep.mubr.f32.mxu0 0.0
        %737 = vmatmul.mubr.f32.gmra.mrb[0].mxu0 %v529
        %v738 = vpop.f32.mrb[0].mxu0
        %v739 = vadd.f32 0.0, %v738
        %v740 = vpop.f32.mrb[0].mxu0
        %741 = vmatprep.mubr.f32.mxu0 0.0
        %742 = vmatmul.mubr.f32.gmra.mrb[0].mxu0 %v532
        %v743 = vpop.f32.mrb[0].mxu0
        %v744 = vadd.f32 0.0, %v743
        %v745 = vpop.f32.mrb[0].mxu0
        %746 = vmatprep.mubr.f32.mxu0 0.0
        %747 = vmatmul.mubr.f32.gmra.mrb[0].mxu0 %v535
        %v748 = vpop.f32.mrb[0].mxu0
        %v749 = vadd.f32 0.0, %v748
        %v750 = vpop.f32.mrb[0].mxu0
        %751 = vmatprep.mubr.f32.mxu0 0.0
        %752 = vmatmul.mubr.f32.gmra.mrb[0].mxu0 %v538
        %v753 = vpop.f32.mrb[0].mxu0
        %v754 = vadd.f32 0.0, %v753
        %v755 = vpop.f32.mrb[0].mxu0
        %756 = vmatprep.mubr.f32.mxu0 0.0
        %757 = vmatmul.mubr.f32.gmra.mrb[0].mxu0 %v541
        %v758 = vpop.f32.mrb[0].mxu0
        %v759 = vadd.f32 0.0, %v758
        %v760 = vpop.f32.mrb[0].mxu0
        %761 = vmatprep.mubr.f32.mxu0 0.0
        %762 = vmatmul.mubr.f32.gmra.mrb[0].mxu0 %v544
        %v763 = vpop.f32.mrb[0].mxu0
        %v764 = vadd.f32 0.0, %v763
        %v765 = vpop.f32.mrb[0].mxu0
        %766 = vmatprep.mubr.f32.mxu0 0.0
        %767 = vmatmul.mubr.f32.gmra.mrb[0].mxu0 %v547
        %v768 = vpop.f32.mrb[0].mxu0
        %v769 = vadd.f32 0.0, %v768
        %v770 = vpop.f32.mrb[0].mxu0
        %771 = vmatprep.mubr.f32.mxu0 0.0
        %772 = vmatmul.mubr.f32.gmra.mrb[0].mxu0 %v550
        %v773 = vpop.f32.mrb[0].mxu0
        %v774 = vadd.f32 0.0, %v773
        %v775 = vpop.f32.mrb[0].mxu0
        %776 = vdwg.mxu0
        %vm777 = vcmask 261120
        %778 = vst.msk [vmem:[#allocation2] sm:$0xff] %vm777, %v619
        %779 = vst.msk [vmem:[#allocation2 + $0x8] sm:$0xff] %vm777, %v624
        %780 = vst.msk [vmem:[#allocation2 + $0x10] sm:$0xff] %vm777, %v629
        %781 = vst.msk [vmem:[#allocation2 + $0x18] sm:$0xff] %vm777, %v634
        %782 = vst.msk [vmem:[#allocation2 + $0x20] sm:$0xff] %vm777, %v639
        %783 = vst.msk [vmem:[#allocation2 + $0x28] sm:$0xff] %vm777, %v644
        %784 = vst.msk [vmem:[#allocation2 + $0x30] sm:$0xff] %vm777, %v649
        %785 = vst.msk [vmem:[#allocation2 + $0x38] sm:$0xff] %vm777, %v654
        %786 = vst.msk [vmem:[#allocation2 + $0x40] sm:$0xff] %vm777, %v659
        %787 = vst.msk [vmem:[#allocation2 + $0x48] sm:$0xff] %vm777, %v664
        %788 = vst.msk [vmem:[#allocation2 + $0x50] sm:$0xff] %vm777, %v669
        %789 = vst.msk [vmem:[#allocation2 + $0x58] sm:$0xff] %vm777, %v674
        %790 = vst.msk [vmem:[#allocation2 + $0x60] sm:$0xff] %vm777, %v679
        %791 = vst.msk [vmem:[#allocation2 + $0x68] sm:$0xff] %vm777, %v684
        %792 = vst.msk [vmem:[#allocation2 + $0x70] sm:$0xff] %vm777, %v689
        %793 = vst.msk [vmem:[#allocation2 + $0x78] sm:$0xff] %vm777, %v694
        %794 = vst.msk [vmem:[#allocation2 + $0x80] sm:$0xff] %vm777, %v699
        %795 = vst.msk [vmem:[#allocation2 + $0x88] sm:$0xff] %vm777, %v704
        %796 = vst.msk [vmem:[#allocation2 + $0x90] sm:$0xff] %vm777, %v709
        %797 = vst.msk [vmem:[#allocation2 + $0x98] sm:$0xff] %vm777, %v714
        %798 = vst.msk [vmem:[#allocation2 + $0xa0] sm:$0xff] %vm777, %v719
        %799 = vst.msk [vmem:[#allocation2 + $0xa8] sm:$0xff] %vm777, %v724
        %800 = vst.msk [vmem:[#allocation2 + $0xb0] sm:$0xff] %vm777, %v729
        %801 = vst.msk [vmem:[#allocation2 + $0xb8] sm:$0xff] %vm777, %v734
        %802 = vst.msk [vmem:[#allocation2 + $0xc0] sm:$0xff] %vm777, %v739
        %803 = vst.msk [vmem:[#allocation2 + $0xc8] sm:$0xff] %vm777, %v744
        %804 = vst.msk [vmem:[#allocation2 + $0xd0] sm:$0xff] %vm777, %v749
        %805 = vst.msk [vmem:[#allocation2 + $0xd8] sm:$0xff] %vm777, %v754
        %806 = vst.msk [vmem:[#allocation2 + $0xe0] sm:$0xff] %vm777, %v759
        %807 = vst.msk [vmem:[#allocation2 + $0xe8] sm:$0xff] %vm777, %v764
        %808 = vst.msk [vmem:[#allocation2 + $0xf0] sm:$0xff] %vm777, %v769
        %809 = vst.msk [vmem:[#allocation2 + $0xf8] sm:$0xff] %vm777, %v774
        %v810 = vld [vmem:[%s356] sm:$0xff]
        %v811 = vld [vmem:[%s356 + $0x8] sm:$0xff]
        %v812 = vld [vmem:[%s356 + $0x10] sm:$0xff]
        %v813 = vld [vmem:[%s356 + $0x18] sm:$0xff]
        %v814 = vld [vmem:[%s356 + $0x20] sm:$0xff]
        %v815 = vld [vmem:[%s356 + $0x28] sm:$0xff]
        %v816 = vld [vmem:[%s356 + $0x30] sm:$0xff]
        %v817 = vld [vmem:[%s356 + $0x38] sm:$0xff]
        %v818 = vld [vmem:[%s356 + $0x40] sm:$0xff]
        %v819 = vld [vmem:[%s356 + $0x48] sm:$0xff]
        %v820 = vld [vmem:[%s356 + $0x50] sm:$0xff]
        %v821 = vld [vmem:[%s356 + $0x58] sm:$0xff]
        %v822 = vld [vmem:[%s356 + $0x60] sm:$0xff]
        %v823 = vld [vmem:[%s356 + $0x68] sm:$0xff]
        %v824 = vld [vmem:[%s356 + $0x70] sm:$0xff]
        %v825 = vld [vmem:[%s356 + $0x78] sm:$0xff]
        %v826 = vld [vmem:[%s356 + $0x80] sm:$0xff]
        %v827 = vld [vmem:[%s356 + $0x88] sm:$0xff]
        %v828 = vld [vmem:[%s356 + $0x90] sm:$0xff]
        %v829 = vld [vmem:[%s356 + $0x98] sm:$0xff]
        %v830 = vld [vmem:[%s356 + $0xa0] sm:$0xff]
        %v831 = vld [vmem:[%s356 + $0xa8] sm:$0xff]
        %v832 = vld [vmem:[%s356 + $0xb0] sm:$0xff]
        %v833 = vld [vmem:[%s356 + $0xb8] sm:$0xff]
        %v834 = vld [vmem:[%s356 + $0xc0] sm:$0xff]
        %v835 = vld [vmem:[%s356 + $0xc8] sm:$0xff]
        %v836 = vld [vmem:[%s356 + $0xd0] sm:$0xff]
        %v837 = vld [vmem:[%s356 + $0xd8] sm:$0xff]
        %v838 = vld [vmem:[%s356 + $0xe0] sm:$0xff]
        %v839 = vld [vmem:[%s356 + $0xe8] sm:$0xff]
        %v840 = vld [vmem:[%s356 + $0xf0] sm:$0xff]
        %v841 = vld [vmem:[%s356 + $0xf8] sm:$0xff]
        %v843 = vsel %vm455, %v810, 0
        %v846 = vsel %vm455, %v811, 0
        %v849 = vsel %vm455, %v812, 0
        %v852 = vsel %vm455, %v813, 0
        %v855 = vsel %vm455, %v814, 0
        %v858 = vsel %vm455, %v815, 0
        %v861 = vsel %vm455, %v816, 0
        %v864 = vsel %vm455, %v817, 0
        %v867 = vsel %vm455, %v818, 0
        %v870 = vsel %vm455, %v819, 0
        %v873 = vsel %vm455, %v820, 0
        %v876 = vsel %vm455, %v821, 0
        %v879 = vsel %vm455, %v822, 0
        %v882 = vsel %vm455, %v823, 0
        %v885 = vsel %vm455, %v824, 0
        %v888 = vsel %vm455, %v825, 0
        %v891 = vsel %vm455, %v826, 0
        %v894 = vsel %vm455, %v827, 0
        %v897 = vsel %vm455, %v828, 0
        %v900 = vsel %vm455, %v829, 0
        %v903 = vsel %vm455, %v830, 0
        %v906 = vsel %vm455, %v831, 0
        %v909 = vsel %vm455, %v832, 0
        %v912 = vsel %vm455, %v833, 0
        %v915 = vsel %vm455, %v834, 0
        %v918 = vsel %vm455, %v835, 0
        %v921 = vsel %vm455, %v836, 0
        %v924 = vsel %vm455, %v837, 0
        %v927 = vsel %vm455, %v838, 0
        %v930 = vsel %vm455, %v839, 0
        %v933 = vsel %vm455, %v840, 0
        %v936 = vsel %vm455, %v841, 0
        %938 = vmatprep.subr.mxu0 0.0
        %939 = vmatpush1.msra.mxu0 %v415
        %940 = vmatprep.subr.mxu0 0.0
        %941 = vmatpush1.msra.mxu0 %v416
        %942 = vmatprep.subr.mxu0 0.0
        %943 = vmatpush1.msra.mxu0 %v417
        %944 = vmatprep.subr.mxu0 0.0
        %945 = vmatpush1.msra.mxu0 %v418
        %946 = vmatprep.subr.mxu0 0.0
        %947 = vmatpush1.msra.mxu0 %v419
        %948 = vmatprep.subr.mxu0 0.0
        %949 = vmatpush1.msra.mxu0 %v420
        %950 = vmatprep.subr.mxu0 0.0
        %951 = vmatpush1.msra.mxu0 %v421
        %952 = vmatprep.subr.mxu0 0.0
        %953 = vmatpush1.msra.mxu0 %v422
        %954 = vmatprep.subr.mxu0 0.0
        %955 = vmatpush1.msra.mxu0 0.0
        %956 = vmatprep.subr.mxu0 0.0
        %957 = vmatpush1.msra.mxu0 0.0
        %958 = vmatprep.subr.mxu0 0.0
        %959 = vmatpush1.msra.mxu0 0.0
        %960 = vmatprep.subr.mxu0 0.0
        %961 = vmatpush1.msra.mxu0 0.0
        %962 = vmatprep.subr.mxu0 0.0
        %963 = vmatpush1.msra.mxu0 0.0
        %964 = vmatprep.subr.mxu0 0.0
        %965 = vmatpush1.msra.mxu0 0.0
        %966 = vmatprep.subr.mxu0 0.0
        %967 = vmatpush1.msra.mxu0 0.0
        %968 = vmatprep.subr.mxu0 0.0
        %969 = vmatpush1.msra.mxu0 0.0
        %970 = vmatprep.subr.mxu0 0.0
        %971 = vmatpush1.msra.mxu0 0.0
        %972 = vmatprep.subr.mxu0 0.0
        %973 = vmatpush1.msra.mxu0 0.0
        %974 = vmatprep.subr.mxu0 0.0
        %975 = vmatpush1.msra.mxu0 0.0
        %976 = vmatprep.subr.mxu0 0.0
        %977 = vmatpush1.msra.mxu0 0.0
        %978 = vmatprep.subr.mxu0 0.0
        %979 = vmatpush1.msra.mxu0 0.0
        %980 = vmatprep.subr.mxu0 0.0
        %981 = vmatpush1.msra.mxu0 0.0
        %982 = vmatprep.subr.mxu0 0.0
        %983 = vmatpush1.msra.mxu0 0.0
        %984 = vmatprep.subr.mxu0 0.0
        %985 = vmatpush1.msra.mxu0 0.0
        %986 = vmatprep.subr.mxu0 0.0
        %987 = vmatpush1.msra.mxu0 0.0
        %988 = vmatprep.subr.mxu0 0.0
        %989 = vmatpush1.msra.mxu0 0.0
        %990 = vmatprep.subr.mxu0 0.0
        %991 = vmatpush1.msra.mxu0 0.0
        %992 = vmatprep.subr.mxu0 0.0
        %993 = vmatpush1.msra.mxu0 0.0
        %994 = vmatprep.subr.mxu0 0.0
        %995 = vmatpush1.msra.mxu0 0.0
        %996 = vmatprep.subr.mxu0 0.0
        %997 = vmatpush1.msra.mxu0 0.0
        %998 = vmatprep.subr.mxu0 0.0
        %999 = vmatpush1.msra.mxu0 0.0
        %1000 = vmatprep.subr.mxu0 0.0
        %1001 = vmatpush1.msra.mxu0 0.0
        %1002 = vmatprep.mubr.f32.mxu0 0.0
        %1003 = vmatmul.mubr.f32.gmra.mrb[0].mxu0 %v843
        %v1004 = vpop.f32.mrb[0].mxu0
        %v1005 = vadd.f32 0.0, %v1004
        %v1006 = vpop.f32.mrb[0].mxu0
        %1007 = vmatprep.mubr.f32.mxu0 0.0
        %1008 = vmatmul.mubr.f32.gmra.mrb[0].mxu0 %v846
        %v1009 = vpop.f32.mrb[0].mxu0
        %v1010 = vadd.f32 0.0, %v1009
        %v1011 = vpop.f32.mrb[0].mxu0
        %1012 = vmatprep.mubr.f32.mxu0 0.0
        %1013 = vmatmul.mubr.f32.gmra.mrb[0].mxu0 %v849
        %v1014 = vpop.f32.mrb[0].mxu0
        %v1015 = vadd.f32 0.0, %v1014
        %v1016 = vpop.f32.mrb[0].mxu0
        %1017 = vmatprep.mubr.f32.mxu0 0.0
        %1018 = vmatmul.mubr.f32.gmra.mrb[0].mxu0 %v852
        %v1019 = vpop.f32.mrb[0].mxu0
        %v1020 = vadd.f32 0.0, %v1019
        %v1021 = vpop.f32.mrb[0].mxu0
        %1022 = vmatprep.mubr.f32.mxu0 0.0
        %1023 = vmatmul.mubr.f32.gmra.mrb[0].mxu0 %v855
        %v1024 = vpop.f32.mrb[0].mxu0
        %v1025 = vadd.f32 0.0, %v1024
        %v1026 = vpop.f32.mrb[0].mxu0
        %1027 = vmatprep.mubr.f32.mxu0 0.0
        %1028 = vmatmul.mubr.f32.gmra.mrb[0].mxu0 %v858
        %v1029 = vpop.f32.mrb[0].mxu0
        %v1030 = vadd.f32 0.0, %v1029
        %v1031 = vpop.f32.mrb[0].mxu0
        %1032 = vmatprep.mubr.f32.mxu0 0.0
        %1033 = vmatmul.mubr.f32.gmra.mrb[0].mxu0 %v861
        %v1034 = vpop.f32.mrb[0].mxu0
        %v1035 = vadd.f32 0.0, %v1034
        %v1036 = vpop.f32.mrb[0].mxu0
        %1037 = vmatprep.mubr.f32.mxu0 0.0
        %1038 = vmatmul.mubr.f32.gmra.mrb[0].mxu0 %v864
        %v1039 = vpop.f32.mrb[0].mxu0
        %v1040 = vadd.f32 0.0, %v1039
        %v1041 = vpop.f32.mrb[0].mxu0
        %1042 = vmatprep.mubr.f32.mxu0 0.0
        %1043 = vmatmul.mubr.f32.gmra.mrb[0].mxu0 %v867
        %v1044 = vpop.f32.mrb[0].mxu0
        %v1045 = vadd.f32 0.0, %v1044
        %v1046 = vpop.f32.mrb[0].mxu0
        %1047 = vmatprep.mubr.f32.mxu0 0.0
        %1048 = vmatmul.mubr.f32.gmra.mrb[0].mxu0 %v870
        %v1049 = vpop.f32.mrb[0].mxu0
        %v1050 = vadd.f32 0.0, %v1049
        %v1051 = vpop.f32.mrb[0].mxu0
        %1052 = vmatprep.mubr.f32.mxu0 0.0
        %1053 = vmatmul.mubr.f32.gmra.mrb[0].mxu0 %v873
        %v1054 = vpop.f32.mrb[0].mxu0
        %v1055 = vadd.f32 0.0, %v1054
        %v1056 = vpop.f32.mrb[0].mxu0
        %1057 = vmatprep.mubr.f32.mxu0 0.0
        %1058 = vmatmul.mubr.f32.gmra.mrb[0].mxu0 %v876
        %v1059 = vpop.f32.mrb[0].mxu0
        %v1060 = vadd.f32 0.0, %v1059
        %v1061 = vpop.f32.mrb[0].mxu0
        %1062 = vmatprep.mubr.f32.mxu0 0.0
        %1063 = vmatmul.mubr.f32.gmra.mrb[0].mxu0 %v879
        %v1064 = vpop.f32.mrb[0].mxu0
        %v1065 = vadd.f32 0.0, %v1064
        %v1066 = vpop.f32.mrb[0].mxu0
        %1067 = vmatprep.mubr.f32.mxu0 0.0
        %1068 = vmatmul.mubr.f32.gmra.mrb[0].mxu0 %v882
        %v1069 = vpop.f32.mrb[0].mxu0
        %v1070 = vadd.f32 0.0, %v1069
        %v1071 = vpop.f32.mrb[0].mxu0
        %1072 = vmatprep.mubr.f32.mxu0 0.0
        %1073 = vmatmul.mubr.f32.gmra.mrb[0].mxu0 %v885
        %v1074 = vpop.f32.mrb[0].mxu0
        %v1075 = vadd.f32 0.0, %v1074
        %v1076 = vpop.f32.mrb[0].mxu0
        %1077 = vmatprep.mubr.f32.mxu0 0.0
        %1078 = vmatmul.mubr.f32.gmra.mrb[0].mxu0 %v888
        %v1079 = vpop.f32.mrb[0].mxu0
        %v1080 = vadd.f32 0.0, %v1079
        %v1081 = vpop.f32.mrb[0].mxu0
        %1082 = vmatprep.mubr.f32.mxu0 0.0
        %1083 = vmatmul.mubr.f32.gmra.mrb[0].mxu0 %v891
        %v1084 = vpop.f32.mrb[0].mxu0
        %v1085 = vadd.f32 0.0, %v1084
        %v1086 = vpop.f32.mrb[0].mxu0
        %1087 = vmatprep.mubr.f32.mxu0 0.0
        %1088 = vmatmul.mubr.f32.gmra.mrb[0].mxu0 %v894
        %v1089 = vpop.f32.mrb[0].mxu0
        %v1090 = vadd.f32 0.0, %v1089
        %v1091 = vpop.f32.mrb[0].mxu0
        %1092 = vmatprep.mubr.f32.mxu0 0.0
        %1093 = vmatmul.mubr.f32.gmra.mrb[0].mxu0 %v897
        %v1094 = vpop.f32.mrb[0].mxu0
        %v1095 = vadd.f32 0.0, %v1094
        %v1096 = vpop.f32.mrb[0].mxu0
        %1097 = vmatprep.mubr.f32.mxu0 0.0
        %1098 = vmatmul.mubr.f32.gmra.mrb[0].mxu0 %v900
        %v1099 = vpop.f32.mrb[0].mxu0
        %v1100 = vadd.f32 0.0, %v1099
        %v1101 = vpop.f32.mrb[0].mxu0
        %1102 = vmatprep.mubr.f32.mxu0 0.0
        %1103 = vmatmul.mubr.f32.gmra.mrb[0].mxu0 %v903
        %v1104 = vpop.f32.mrb[0].mxu0
        %v1105 = vadd.f32 0.0, %v1104
        %v1106 = vpop.f32.mrb[0].mxu0
        %1107 = vmatprep.mubr.f32.mxu0 0.0
        %1108 = vmatmul.mubr.f32.gmra.mrb[0].mxu0 %v906
        %v1109 = vpop.f32.mrb[0].mxu0
        %v1110 = vadd.f32 0.0, %v1109
        %v1111 = vpop.f32.mrb[0].mxu0
        %1112 = vmatprep.mubr.f32.mxu0 0.0
        %1113 = vmatmul.mubr.f32.gmra.mrb[0].mxu0 %v909
        %v1114 = vpop.f32.mrb[0].mxu0
        %v1115 = vadd.f32 0.0, %v1114
        %v1116 = vpop.f32.mrb[0].mxu0
        %1117 = vmatprep.mubr.f32.mxu0 0.0
        %1118 = vmatmul.mubr.f32.gmra.mrb[0].mxu0 %v912
        %v1119 = vpop.f32.mrb[0].mxu0
        %v1120 = vadd.f32 0.0, %v1119
        %v1121 = vpop.f32.mrb[0].mxu0
        %1122 = vmatprep.mubr.f32.mxu0 0.0
        %1123 = vmatmul.mubr.f32.gmra.mrb[0].mxu0 %v915
        %v1124 = vpop.f32.mrb[0].mxu0
        %v1125 = vadd.f32 0.0, %v1124
        %v1126 = vpop.f32.mrb[0].mxu0
        %1127 = vmatprep.mubr.f32.mxu0 0.0
        %1128 = vmatmul.mubr.f32.gmra.mrb[0].mxu0 %v918
        %v1129 = vpop.f32.mrb[0].mxu0
        %v1130 = vadd.f32 0.0, %v1129
        %v1131 = vpop.f32.mrb[0].mxu0
        %1132 = vmatprep.mubr.f32.mxu0 0.0
        %1133 = vmatmul.mubr.f32.gmra.mrb[0].mxu0 %v921
        %v1134 = vpop.f32.mrb[0].mxu0
        %v1135 = vadd.f32 0.0, %v1134
        %v1136 = vpop.f32.mrb[0].mxu0
        %1137 = vmatprep.mubr.f32.mxu0 0.0
        %1138 = vmatmul.mubr.f32.gmra.mrb[0].mxu0 %v924
        %v1139 = vpop.f32.mrb[0].mxu0
        %v1140 = vadd.f32 0.0, %v1139
        %v1141 = vpop.f32.mrb[0].mxu0
        %1142 = vmatprep.mubr.f32.mxu0 0.0
        %1143 = vmatmul.mubr.f32.gmra.mrb[0].mxu0 %v927
        %v1144 = vpop.f32.mrb[0].mxu0
        %v1145 = vadd.f32 0.0, %v1144
        %v1146 = vpop.f32.mrb[0].mxu0
        %1147 = vmatprep.mubr.f32.mxu0 0.0
        %1148 = vmatmul.mubr.f32.gmra.mrb[0].mxu0 %v930
        %v1149 = vpop.f32.mrb[0].mxu0
        %v1150 = vadd.f32 0.0, %v1149
        %v1151 = vpop.f32.mrb[0].mxu0
        %1152 = vmatprep.mubr.f32.mxu0 0.0
        %1153 = vmatmul.mubr.f32.gmra.mrb[0].mxu0 %v933
        %v1154 = vpop.f32.mrb[0].mxu0
        %v1155 = vadd.f32 0.0, %v1154
        %v1156 = vpop.f32.mrb[0].mxu0
        %1157 = vmatprep.mubr.f32.mxu0 0.0
        %1158 = vmatmul.mubr.f32.gmra.mrb[0].mxu0 %v936
        %v1159 = vpop.f32.mrb[0].mxu0
        %v1160 = vadd.f32 0.0, %v1159
        %v1161 = vpop.f32.mrb[0].mxu0
        %1162 = vdwg.mxu0
        %1163 = vst.msk [vmem:[#allocation3] sm:$0xff] %vm777, %v1005
        %1164 = vst.msk [vmem:[#allocation3 + $0x8] sm:$0xff] %vm777, %v1010
        %1165 = vst.msk [vmem:[#allocation3 + $0x10] sm:$0xff] %vm777, %v1015
        %1166 = vst.msk [vmem:[#allocation3 + $0x18] sm:$0xff] %vm777, %v1020
        %1167 = vst.msk [vmem:[#allocation3 + $0x20] sm:$0xff] %vm777, %v1025
        %1168 = vst.msk [vmem:[#allocation3 + $0x28] sm:$0xff] %vm777, %v1030
        %1169 = vst.msk [vmem:[#allocation3 + $0x30] sm:$0xff] %vm777, %v1035
        %1170 = vst.msk [vmem:[#allocation3 + $0x38] sm:$0xff] %vm777, %v1040
        %1171 = vst.msk [vmem:[#allocation3 + $0x40] sm:$0xff] %vm777, %v1045
        %1172 = vst.msk [vmem:[#allocation3 + $0x48] sm:$0xff] %vm777, %v1050
        %1173 = vst.msk [vmem:[#allocation3 + $0x50] sm:$0xff] %vm777, %v1055
        %1174 = vst.msk [vmem:[#allocation3 + $0x58] sm:$0xff] %vm777, %v1060
        %1175 = vst.msk [vmem:[#allocation3 + $0x60] sm:$0xff] %vm777, %v1065
        %1176 = vst.msk [vmem:[#allocation3 + $0x68] sm:$0xff] %vm777, %v1070
        %1177 = vst.msk [vmem:[#allocation3 + $0x70] sm:$0xff] %vm777, %v1075
        %1178 = vst.msk [vmem:[#allocation3 + $0x78] sm:$0xff] %vm777, %v1080
        %1179 = vst.msk [vmem:[#allocation3 + $0x80] sm:$0xff] %vm777, %v1085
        %1180 = vst.msk [vmem:[#allocation3 + $0x88] sm:$0xff] %vm777, %v1090
        %1181 = vst.msk [vmem:[#allocation3 + $0x90] sm:$0xff] %vm777, %v1095
        %1182 = vst.msk [vmem:[#allocation3 + $0x98] sm:$0xff] %vm777, %v1100
        %1183 = vst.msk [vmem:[#allocation3 + $0xa0] sm:$0xff] %vm777, %v1105
        %1184 = vst.msk [vmem:[#allocation3 + $0xa8] sm:$0xff] %vm777, %v1110
        %1185 = vst.msk [vmem:[#allocation3 + $0xb0] sm:$0xff] %vm777, %v1115
        %1186 = vst.msk [vmem:[#allocation3 + $0xb8] sm:$0xff] %vm777, %v1120
        %1187 = vst.msk [vmem:[#allocation3 + $0xc0] sm:$0xff] %vm777, %v1125
        %1188 = vst.msk [vmem:[#allocation3 + $0xc8] sm:$0xff] %vm777, %v1130
        %1189 = vst.msk [vmem:[#allocation3 + $0xd0] sm:$0xff] %vm777, %v1135
        %1190 = vst.msk [vmem:[#allocation3 + $0xd8] sm:$0xff] %vm777, %v1140
        %1191 = vst.msk [vmem:[#allocation3 + $0xe0] sm:$0xff] %vm777, %v1145
        %1192 = vst.msk [vmem:[#allocation3 + $0xe8] sm:$0xff] %vm777, %v1150
        %1193 = vst.msk [vmem:[#allocation3 + $0xf0] sm:$0xff] %vm777, %v1155
        %1194 = vst.msk [vmem:[#allocation3 + $0xf8] sm:$0xff] %vm777, %v1160
      $region44: #{tpu_custom_call.1} parent=39 // pred_fallthru
        _
      %v1195 = vld [vmem:[%s369] sm:$0xff]
      %v1196 = vld [vmem:[%s369 + $0x8] sm:$0xff]
      %v1197 = vld [vmem:[%s369 + $0x10] sm:$0xff]
      %v1198 = vld [vmem:[%s369 + $0x18] sm:$0xff]
      %v1199 = vld [vmem:[%s369 + $0x20] sm:$0xff]
      %v1200 = vld [vmem:[%s369 + $0x28] sm:$0xff]
      %v1201 = vld [vmem:[%s369 + $0x30] sm:$0xff]
      %v1202 = vld [vmem:[%s369 + $0x38] sm:$0xff]
      %v1203 = vmul.f32 %v1195, 0.17677669
      %v1204 = vmul.f32 %v1196, 0.17677669
      %v1205 = vmul.f32 %v1197, 0.17677669
      %v1206 = vmul.f32 %v1198, 0.17677669
      %v1207 = vmul.f32 %v1199, 0.17677669
      %v1208 = vmul.f32 %v1200, 0.17677669
      %v1209 = vmul.f32 %v1201, 0.17677669
      %v1210 = vmul.f32 %v1202, 0.17677669
      %v1211 = vld [vmem:[#allocation2] sm:$0xff]
      %v1212 = vld [vmem:[#allocation2 + $0x8] sm:$0xff]
      %v1213 = vld [vmem:[#allocation2 + $0x10] sm:$0xff]
      %v1214 = vld [vmem:[#allocation2 + $0x18] sm:$0xff]
      %v1215 = vld [vmem:[#allocation2 + $0x20] sm:$0xff]
      %v1216 = vld [vmem:[#allocation2 + $0x28] sm:$0xff]
      %v1217 = vld [vmem:[#allocation2 + $0x30] sm:$0xff]
      %v1218 = vld [vmem:[#allocation2 + $0x38] sm:$0xff]
      %v1219 = vld [vmem:[#allocation2 + $0x40] sm:$0xff]
      %v1220 = vld [vmem:[#allocation2 + $0x48] sm:$0xff]
      %v1221 = vld [vmem:[#allocation2 + $0x50] sm:$0xff]
      %v1222 = vld [vmem:[#allocation2 + $0x58] sm:$0xff]
      %v1223 = vld [vmem:[#allocation2 + $0x60] sm:$0xff]
      %v1224 = vld [vmem:[#allocation2 + $0x68] sm:$0xff]
      %v1225 = vld [vmem:[#allocation2 + $0x70] sm:$0xff]
      %v1226 = vld [vmem:[#allocation2 + $0x78] sm:$0xff]
      %v1227 = vld [vmem:[#allocation2 + $0x80] sm:$0xff]
      %v1228 = vld [vmem:[#allocation2 + $0x88] sm:$0xff]
      %v1229 = vld [vmem:[#allocation2 + $0x90] sm:$0xff]
      %v1230 = vld [vmem:[#allocation2 + $0x98] sm:$0xff]
      %v1231 = vld [vmem:[#allocation2 + $0xa0] sm:$0xff]
      %v1232 = vld [vmem:[#allocation2 + $0xa8] sm:$0xff]
      %v1233 = vld [vmem:[#allocation2 + $0xb0] sm:$0xff]
      %v1234 = vld [vmem:[#allocation2 + $0xb8] sm:$0xff]
      %v1235 = vld [vmem:[#allocation2 + $0xc0] sm:$0xff]
      %v1236 = vld [vmem:[#allocation2 + $0xc8] sm:$0xff]
      %v1237 = vld [vmem:[#allocation2 + $0xd0] sm:$0xff]
      %v1238 = vld [vmem:[#allocation2 + $0xd8] sm:$0xff]
      %v1239 = vld [vmem:[#allocation2 + $0xe0] sm:$0xff]
      %v1240 = vld [vmem:[#allocation2 + $0xe8] sm:$0xff]
      %v1241 = vld [vmem:[#allocation2 + $0xf0] sm:$0xff]
      %v1242 = vld [vmem:[#allocation2 + $0xf8] sm:$0xff]
      %vm1243 = vcmask 261120
      %v1245 = vsel %vm1243, %v1203, 0
      %v1248 = vsel %vm1243, %v1204, 0
      %v1251 = vsel %vm1243, %v1205, 0
      %v1254 = vsel %vm1243, %v1206, 0
      %v1257 = vsel %vm1243, %v1207, 0
      %v1260 = vsel %vm1243, %v1208, 0
      %v1263 = vsel %vm1243, %v1209, 0
      %v1266 = vsel %vm1243, %v1210, 0
      %v1269 = vsel %vm1243, %v1211, 0
      %v1272 = vsel %vm1243, %v1212, 0
      %v1275 = vsel %vm1243, %v1213, 0
      %v1278 = vsel %vm1243, %v1214, 0
      %v1281 = vsel %vm1243, %v1215, 0
      %v1284 = vsel %vm1243, %v1216, 0
      %v1287 = vsel %vm1243, %v1217, 0
      %v1290 = vsel %vm1243, %v1218, 0
      %v1293 = vsel %vm1243, %v1219, 0
      %v1296 = vsel %vm1243, %v1220, 0
      %v1299 = vsel %vm1243, %v1221, 0
      %v1302 = vsel %vm1243, %v1222, 0
      %v1305 = vsel %vm1243, %v1223, 0
      %v1308 = vsel %vm1243, %v1224, 0
      %v1311 = vsel %vm1243, %v1225, 0
      %v1314 = vsel %vm1243, %v1226, 0
      %v1317 = vsel %vm1243, %v1227, 0
      %v1320 = vsel %vm1243, %v1228, 0
      %v1323 = vsel %vm1243, %v1229, 0
      %v1326 = vsel %vm1243, %v1230, 0
      %v1329 = vsel %vm1243, %v1231, 0
      %v1332 = vsel %vm1243, %v1232, 0
      %v1335 = vsel %vm1243, %v1233, 0
      %v1338 = vsel %vm1243, %v1234, 0
      %v1341 = vsel %vm1243, %v1235, 0
      %v1344 = vsel %vm1243, %v1236, 0
      %v1347 = vsel %vm1243, %v1237, 0
      %v1350 = vsel %vm1243, %v1238, 0
      %v1353 = vsel %vm1243, %v1239, 0
      %v1356 = vsel %vm1243, %v1240, 0
      %v1359 = vsel %vm1243, %v1241, 0
      %v1362 = vsel %vm1243, %v1242, 0
      %1364 = vmatprep.subr.mxu0 0.0
      %1365 = vmatpush1.xpose.msra.mxu0 %v1269
      %1366 = vmatprep.subr.mxu0 0.0
      %1367 = vmatpush1.xpose.msra.mxu0 %v1272
      %1368 = vmatprep.subr.mxu0 0.0
      %1369 = vmatpush1.xpose.msra.mxu0 %v1275
      %1370 = vmatprep.subr.mxu0 0.0
      %1371 = vmatpush1.xpose.msra.mxu0 %v1278
      %1372 = vmatprep.subr.mxu0 0.0
      %1373 = vmatpush1.xpose.msra.mxu0 %v1281
      %1374 = vmatprep.subr.mxu0 0.0
      %1375 = vmatpush1.xpose.msra.mxu0 %v1284
      %1376 = vmatprep.subr.mxu0 0.0
      %1377 = vmatpush1.xpose.msra.mxu0 %v1287
      %1378 = vmatprep.subr.mxu0 0.0
      %1379 = vmatpush1.xpose.msra.mxu0 %v1290
      %1380 = vmatprep.subr.mxu0 0.0
      %1381 = vmatpush1.xpose.msra.mxu0 %v1293
      %1382 = vmatprep.subr.mxu0 0.0
      %1383 = vmatpush1.xpose.msra.mxu0 %v1296
      %1384 = vmatprep.subr.mxu0 0.0
      %1385 = vmatpush1.xpose.msra.mxu0 %v1299
      %1386 = vmatprep.subr.mxu0 0.0
      %1387 = vmatpush1.xpose.msra.mxu0 %v1302
      %1388 = vmatprep.subr.mxu0 0.0
      %1389 = vmatpush1.xpose.msra.mxu0 %v1305
      %1390 = vmatprep.subr.mxu0 0.0
      %1391 = vmatpush1.xpose.msra.mxu0 %v1308
      %1392 = vmatprep.subr.mxu0 0.0
      %1393 = vmatpush1.xpose.msra.mxu0 %v1311
      %1394 = vmatprep.subr.mxu0 0.0
      %1395 = vmatpush1.xpose.msra.mxu0 %v1314
      %1396 = vmatprep.subr.mxu0 0.0
      %1397 = vmatpush1.xpose.msra.mxu0 %v1317
      %1398 = vmatprep.subr.mxu0 0.0
      %1399 = vmatpush1.xpose.msra.mxu0 %v1320
      %1400 = vmatprep.subr.mxu0 0.0
      %1401 = vmatpush1.xpose.msra.mxu0 %v1323
      %1402 = vmatprep.subr.mxu0 0.0
      %1403 = vmatpush1.xpose.msra.mxu0 %v1326
      %1404 = vmatprep.subr.mxu0 0.0
      %1405 = vmatpush1.xpose.msra.mxu0 %v1329
      %1406 = vmatprep.subr.mxu0 0.0
      %1407 = vmatpush1.xpose.msra.mxu0 %v1332
      %1408 = vmatprep.subr.mxu0 0.0
      %1409 = vmatpush1.xpose.msra.mxu0 %v1335
      %1410 = vmatprep.subr.mxu0 0.0
      %1411 = vmatpush1.xpose.msra.mxu0 %v1338
      %1412 = vmatprep.subr.mxu0 0.0
      %1413 = vmatpush1.xpose.msra.mxu0 %v1341
      %1414 = vmatprep.subr.mxu0 0.0
      %1415 = vmatpush1.xpose.msra.mxu0 %v1344
      %1416 = vmatprep.subr.mxu0 0.0
      %1417 = vmatpush1.xpose.msra.mxu0 %v1347
      %1418 = vmatprep.subr.mxu0 0.0
      %1419 = vmatpush1.xpose.msra.mxu0 %v1350
      %1420 = vmatprep.subr.mxu0 0.0
      %1421 = vmatpush1.xpose.msra.mxu0 %v1353
      %1422 = vmatprep.subr.mxu0 0.0
      %1423 = vmatpush1.xpose.msra.mxu0 %v1356
      %1424 = vmatprep.subr.mxu0 0.0
      %1425 = vmatpush1.xpose.msra.mxu0 %v1359
      %1426 = vmatprep.subr.mxu0 0.0
      %1427 = vmatpush1.xpose.msra.mxu0 %v1362
      %1428 = vmatprep.mubr.f32.mxu0 0.0
      %1429 = vmatmul.mubr.f32.gmra.mrb[0].mxu0 %v1245
      %v1430 = vpop.f32.mrb[0].mxu0
      %v1431 = vadd.f32 0.0, %v1430
      %v1432 = vpop.f32.mrb[0].mxu0
      %v1433 = vadd.f32 0.0, %v1432
      %1434 = vmatprep.mubr.f32.mxu0 0.0
      %1435 = vmatmul.mubr.f32.gmra.mrb[0].mxu0 %v1248
      %v1436 = vpop.f32.mrb[0].mxu0
      %v1437 = vadd.f32 0.0, %v1436
      %v1438 = vpop.f32.mrb[0].mxu0
      %v1439 = vadd.f32 0.0, %v1438
      %1440 = vmatprep.mubr.f32.mxu0 0.0
      %1441 = vmatmul.mubr.f32.gmra.mrb[0].mxu0 %v1251
      %v1442 = vpop.f32.mrb[0].mxu0
      %v1443 = vadd.f32 0.0, %v1442
      %v1444 = vpop.f32.mrb[0].mxu0
      %v1445 = vadd.f32 0.0, %v1444
      %1446 = vmatprep.mubr.f32.mxu0 0.0
      %1447 = vmatmul.mubr.f32.gmra.mrb[0].mxu0 %v1254
      %v1448 = vpop.f32.mrb[0].mxu0
      %v1449 = vadd.f32 0.0, %v1448
      %v1450 = vpop.f32.mrb[0].mxu0
      %v1451 = vadd.f32 0.0, %v1450
      %1452 = vmatprep.mubr.f32.mxu0 0.0
      %1453 = vmatmul.mubr.f32.gmra.mrb[0].mxu0 %v1257
      %v1454 = vpop.f32.mrb[0].mxu0
      %v1455 = vadd.f32 0.0, %v1454
      %v1456 = vpop.f32.mrb[0].mxu0
      %v1457 = vadd.f32 0.0, %v1456
      %1458 = vmatprep.mubr.f32.mxu0 0.0
      %1459 = vmatmul.mubr.f32.gmra.mrb[0].mxu0 %v1260
      %v1460 = vpop.f32.mrb[0].mxu0
      %v1461 = vadd.f32 0.0, %v1460
      %v1462 = vpop.f32.mrb[0].mxu0
      %v1463 = vadd.f32 0.0, %v1462
      %1464 = vmatprep.mubr.f32.mxu0 0.0
      %1465 = vmatmul.mubr.f32.gmra.mrb[0].mxu0 %v1263
      %v1466 = vpop.f32.mrb[0].mxu0
      %v1467 = vadd.f32 0.0, %v1466
      %v1468 = vpop.f32.mrb[0].mxu0
      %v1469 = vadd.f32 0.0, %v1468
      %1470 = vmatprep.mubr.f32.mxu0 0.0
      %1471 = vmatmul.mubr.f32.gmra.mrb[0].mxu0 %v1266
      %v1472 = vpop.f32.mrb[0].mxu0
      %v1473 = vadd.f32 0.0, %v1472
      %v1474 = vpop.f32.mrb[0].mxu0
      %v1475 = vadd.f32 0.0, %v1474
      %1476 = vdwg.mxu0
      %v1477 = vmax.f32 %v1431, %v1433
      %1478 = vmax.xlane.f32.xlu0 %v1477
      %v1479 = vpop.xlane.xlu0 %1478
      %v1480 = vmax.f32 %v1437, %v1439
      %1481 = vmax.xlane.f32.xlu0 %v1480
      %v1482 = vpop.xlane.xlu0 %1481
      %v1483 = vmax.f32 %v1443, %v1445
      %1484 = vmax.xlane.f32.xlu0 %v1483
      %v1485 = vpop.xlane.xlu0 %1484
      %v1486 = vmax.f32 %v1449, %v1451
      %1487 = vmax.xlane.f32.xlu0 %v1486
      %v1488 = vpop.xlane.xlu0 %1487
      %v1489 = vmax.f32 %v1455, %v1457
      %1490 = vmax.xlane.f32.xlu0 %v1489
      %v1491 = vpop.xlane.xlu0 %1490
      %v1492 = vmax.f32 %v1461, %v1463
      %1493 = vmax.xlane.f32.xlu0 %v1492
      %v1494 = vpop.xlane.xlu0 %1493
      %v1495 = vmax.f32 %v1467, %v1469
      %1496 = vmax.xlane.f32.xlu0 %v1495
      %v1497 = vpop.xlane.xlu0 %1496
      %v1498 = vmax.f32 %v1473, %v1475
      %1499 = vmax.xlane.f32.xlu0 %v1498
      %v1500 = vpop.xlane.xlu0 %1499
      %v1501 = vsub.f32 %v1431, %v1479
      %v1502 = vsub.f32 %v1433, %v1479
      %v1503 = vsub.f32 %v1437, %v1482
      %v1504 = vsub.f32 %v1439, %v1482
      %v1505 = vsub.f32 %v1443, %v1485
      %v1506 = vsub.f32 %v1445, %v1485
      %v1507 = vsub.f32 %v1449, %v1488
      %v1508 = vsub.f32 %v1451, %v1488
      %v1509 = vsub.f32 %v1455, %v1491
      %v1510 = vsub.f32 %v1457, %v1491
      %v1511 = vsub.f32 %v1461, %v1494
      %v1512 = vsub.f32 %v1463, %v1494
      %v1513 = vsub.f32 %v1467, %v1497
      %v1514 = vsub.f32 %v1469, %v1497
      %v1515 = vsub.f32 %v1473, %v1500
      %v1516 = vsub.f32 %v1475, %v1500
      %v1517 = vmul.f32 %v1501, 1.442695
      %v1518 = vpow.pop %v1517
      %v1519 = vmul.f32 %v1502, 1.442695
      %v1520 = vpow.pop %v1519
      %v1521 = vmul.f32 %v1503, 1.442695
      %v1522 = vpow.pop %v1521
      %v1523 = vmul.f32 %v1504, 1.442695
      %v1524 = vpow.pop %v1523
      %v1525 = vmul.f32 %v1505, 1.442695
      %v1526 = vpow.pop %v1525
      %v1527 = vmul.f32 %v1506, 1.442695
      %v1528 = vpow.pop %v1527
      %v1529 = vmul.f32 %v1507, 1.442695
      %v1530 = vpow.pop %v1529
      %v1531 = vmul.f32 %v1508, 1.442695
      %v1532 = vpow.pop %v1531
      %v1533 = vmul.f32 %v1509, 1.442695
      %v1534 = vpow.pop %v1533
      %v1535 = vmul.f32 %v1510, 1.442695
      %v1536 = vpow.pop %v1535
      %v1537 = vmul.f32 %v1511, 1.442695
      %v1538 = vpow.pop %v1537
      %v1539 = vmul.f32 %v1512, 1.442695
      %v1540 = vpow.pop %v1539
      %v1541 = vmul.f32 %v1513, 1.442695
      %v1542 = vpow.pop %v1541
      %v1543 = vmul.f32 %v1514, 1.442695
      %v1544 = vpow.pop %v1543
      %v1545 = vmul.f32 %v1515, 1.442695
      %v1546 = vpow.pop %v1545
      %v1547 = vmul.f32 %v1516, 1.442695
      %v1548 = vpow.pop %v1547
      %v1549 = vadd.f32 %v1518, %v1520
      %1550 = vadd.xlane.f32.xlu0 %v1549
      %v1551 = vpop.xlane.xlu0 %1550
      %v1552 = vadd.f32 %v1522, %v1524
      %1553 = vadd.xlane.f32.xlu0 %v1552
      %v1554 = vpop.xlane.xlu0 %1553
      %v1555 = vadd.f32 %v1526, %v1528
      %1556 = vadd.xlane.f32.xlu0 %v1555
      %v1557 = vpop.xlane.xlu0 %1556
      %v1558 = vadd.f32 %v1530, %v1532
      %1559 = vadd.xlane.f32.xlu0 %v1558
      %v1560 = vpop.xlane.xlu0 %1559
      %v1561 = vadd.f32 %v1534, %v1536
      %1562 = vadd.xlane.f32.xlu0 %v1561
      %v1563 = vpop.xlane.xlu0 %1562
      %v1564 = vadd.f32 %v1538, %v1540
      %1565 = vadd.xlane.f32.xlu0 %v1564
      %v1566 = vpop.xlane.xlu0 %1565
      %v1567 = vadd.f32 %v1542, %v1544
      %1568 = vadd.xlane.f32.xlu0 %v1567
      %v1569 = vpop.xlane.xlu0 %1568
      %v1570 = vadd.f32 %v1546, %v1548
      %1571 = vadd.xlane.f32.xlu0 %v1570
      %v1572 = vpop.xlane.xlu0 %1571
      %v1573 = vld [vmem:[#allocation3] sm:$0xff]
      %v1574 = vld [vmem:[#allocation3 + $0x8] sm:$0xff]
      %v1575 = vld [vmem:[#allocation3 + $0x10] sm:$0xff]
      %v1576 = vld [vmem:[#allocation3 + $0x18] sm:$0xff]
      %v1577 = vld [vmem:[#allocation3 + $0x20] sm:$0xff]
      %v1578 = vld [vmem:[#allocation3 + $0x28] sm:$0xff]
      %v1579 = vld [vmem:[#allocation3 + $0x30] sm:$0xff]
      %v1580 = vld [vmem:[#allocation3 + $0x38] sm:$0xff]
      %v1581 = vld [vmem:[#allocation3 + $0x40] sm:$0xff]
      %v1582 = vld [vmem:[#allocation3 + $0x48] sm:$0xff]
      %v1583 = vld [vmem:[#allocation3 + $0x50] sm:$0xff]
      %v1584 = vld [vmem:[#allocation3 + $0x58] sm:$0xff]
      %v1585 = vld [vmem:[#allocation3 + $0x60] sm:$0xff]
      %v1586 = vld [vmem:[#allocation3 + $0x68] sm:$0xff]
      %v1587 = vld [vmem:[#allocation3 + $0x70] sm:$0xff]
      %v1588 = vld [vmem:[#allocation3 + $0x78] sm:$0xff]
      %v1589 = vld [vmem:[#allocation3 + $0x80] sm:$0xff]
      %v1590 = vld [vmem:[#allocation3 + $0x88] sm:$0xff]
      %v1591 = vld [vmem:[#allocation3 + $0x90] sm:$0xff]
      %v1592 = vld [vmem:[#allocation3 + $0x98] sm:$0xff]
      %v1593 = vld [vmem:[#allocation3 + $0xa0] sm:$0xff]
      %v1594 = vld [vmem:[#allocation3 + $0xa8] sm:$0xff]
      %v1595 = vld [vmem:[#allocation3 + $0xb0] sm:$0xff]
      %v1596 = vld [vmem:[#allocation3 + $0xb8] sm:$0xff]
      %v1597 = vld [vmem:[#allocation3 + $0xc0] sm:$0xff]
      %v1598 = vld [vmem:[#allocation3 + $0xc8] sm:$0xff]
      %v1599 = vld [vmem:[#allocation3 + $0xd0] sm:$0xff]
      %v1600 = vld [vmem:[#allocation3 + $0xd8] sm:$0xff]
      %v1601 = vld [vmem:[#allocation3 + $0xe0] sm:$0xff]
      %v1602 = vld [vmem:[#allocation3 + $0xe8] sm:$0xff]
      %v1603 = vld [vmem:[#allocation3 + $0xf0] sm:$0xff]
      %v1604 = vld [vmem:[#allocation3 + $0xf8] sm:$0xff]
      %1605 = vmatprep.subr.mxu0 0.0
      %1606 = vmatpush1.msra.mxu0 %v1573
      %1607 = vmatprep.subr.mxu0 0.0
      %1608 = vmatpush1.msra.mxu0 %v1574
      %1609 = vmatprep.subr.mxu0 0.0
      %1610 = vmatpush1.msra.mxu0 %v1575
      %1611 = vmatprep.subr.mxu0 0.0
      %1612 = vmatpush1.msra.mxu0 %v1576
      %1613 = vmatprep.subr.mxu0 0.0
      %1614 = vmatpush1.msra.mxu0 %v1577
      %1615 = vmatprep.subr.mxu0 0.0
      %1616 = vmatpush1.msra.mxu0 %v1578
      %1617 = vmatprep.subr.mxu0 0.0
      %1618 = vmatpush1.msra.mxu0 %v1579
      %1619 = vmatprep.subr.mxu0 0.0
      %1620 = vmatpush1.msra.mxu0 %v1580
      %1621 = vmatprep.subr.mxu0 0.0
      %1622 = vmatpush1.msra.mxu0 %v1581
      %1623 = vmatprep.subr.mxu0 0.0
      %1624 = vmatpush1.msra.mxu0 %v1582
      %1625 = vmatprep.subr.mxu0 0.0
      %1626 = vmatpush1.msra.mxu0 %v1583
      %1627 = vmatprep.subr.mxu0 0.0
      %1628 = vmatpush1.msra.mxu0 %v1584
      %1629 = vmatprep.subr.mxu0 0.0
      %1630 = vmatpush1.msra.mxu0 %v1585
      %1631 = vmatprep.subr.mxu0 0.0
      %1632 = vmatpush1.msra.mxu0 %v1586
      %1633 = vmatprep.subr.mxu0 0.0
      %1634 = vmatpush1.msra.mxu0 %v1587
      %1635 = vmatprep.subr.mxu0 0.0
      %1636 = vmatpush1.msra.mxu0 %v1588
      %1637 = vmatprep.subr.mxu0 0.0
      %1638 = vmatpush1.msra.mxu0 %v1589
      %1639 = vmatprep.subr.mxu0 0.0
      %1640 = vmatpush1.msra.mxu0 %v1590
      %1641 = vmatprep.subr.mxu0 0.0
      %1642 = vmatpush1.msra.mxu0 %v1591
      %1643 = vmatprep.subr.mxu0 0.0
      %1644 = vmatpush1.msra.mxu0 %v1592
      %1645 = vmatprep.subr.mxu0 0.0
      %1646 = vmatpush1.msra.mxu0 %v1593
      %1647 = vmatprep.subr.mxu0 0.0
      %1648 = vmatpush1.msra.mxu0 %v1594
      %1649 = vmatprep.subr.mxu0 0.0
      %1650 = vmatpush1.msra.mxu0 %v1595
      %1651 = vmatprep.subr.mxu0 0.0
      %1652 = vmatpush1.msra.mxu0 %v1596
      %1653 = vmatprep.subr.mxu0 0.0
      %1654 = vmatpush1.msra.mxu0 %v1597
      %1655 = vmatprep.subr.mxu0 0.0
      %1656 = vmatpush1.msra.mxu0 %v1598
      %1657 = vmatprep.subr.mxu0 0.0
      %1658 = vmatpush1.msra.mxu0 %v1599
      %1659 = vmatprep.subr.mxu0 0.0
      %1660 = vmatpush1.msra.mxu0 %v1600
      %1661 = vmatprep.subr.mxu0 0.0
      %1662 = vmatpush1.msra.mxu0 %v1601
      %1663 = vmatprep.subr.mxu0 0.0
      %1664 = vmatpush1.msra.mxu0 %v1602
      %1665 = vmatprep.subr.mxu0 0.0
      %1666 = vmatpush1.msra.mxu0 %v1603
      %1667 = vmatprep.subr.mxu0 0.0
      %1668 = vmatpush1.msra.mxu0 %v1604
      %1669 = vmatprep.mubr.f32.mxu0 %v1520
      %1670 = vmatmul.mubr.f32.gmra.mrb[0].mxu0 %v1518
      %v1671 = vpop.f32.mrb[0].mxu0
      %v1672 = vadd.f32 0.0, %v1671
      %v1673 = vpop.f32.mrb[0].mxu0
      %1674 = vmatprep.mubr.f32.mxu0 %v1524
      %1675 = vmatmul.mubr.f32.gmra.mrb[0].mxu0 %v1522
      %v1676 = vpop.f32.mrb[0].mxu0
      %v1677 = vadd.f32 0.0, %v1676
      %v1678 = vpop.f32.mrb[0].mxu0
      %1679 = vmatprep.mubr.f32.mxu0 %v1528
      %1680 = vmatmul.mubr.f32.gmra.mrb[0].mxu0 %v1526
      %v1681 = vpop.f32.mrb[0].mxu0
      %v1682 = vadd.f32 0.0, %v1681
      %v1683 = vpop.f32.mrb[0].mxu0
      %1684 = vmatprep.mubr.f32.mxu0 %v1532
      %1685 = vmatmul.mubr.f32.gmra.mrb[0].mxu0 %v1530
      %v1686 = vpop.f32.mrb[0].mxu0
      %v1687 = vadd.f32 0.0, %v1686
      %v1688 = vpop.f32.mrb[0].mxu0
      %1689 = vmatprep.mubr.f32.mxu0 %v1536
      %1690 = vmatmul.mubr.f32.gmra.mrb[0].mxu0 %v1534
      %v1691 = vpop.f32.mrb[0].mxu0
      %v1692 = vadd.f32 0.0, %v1691
      %v1693 = vpop.f32.mrb[0].mxu0
      %1694 = vmatprep.mubr.f32.mxu0 %v1540
      %1695 = vmatmul.mubr.f32.gmra.mrb[0].mxu0 %v1538
      %v1696 = vpop.f32.mrb[0].mxu0
      %v1697 = vadd.f32 0.0, %v1696
      %v1698 = vpop.f32.mrb[0].mxu0
      %1699 = vmatprep.mubr.f32.mxu0 %v1544
      %1700 = vmatmul.mubr.f32.gmra.mrb[0].mxu0 %v1542
      %v1701 = vpop.f32.mrb[0].mxu0
      %v1702 = vadd.f32 0.0, %v1701
      %v1703 = vpop.f32.mrb[0].mxu0
      %1704 = vmatprep.mubr.f32.mxu0 %v1548
      %1705 = vmatmul.mubr.f32.gmra.mrb[0].mxu0 %v1546
      %v1706 = vpop.f32.mrb[0].mxu0
      %v1707 = vadd.f32 0.0, %v1706
      %v1708 = vpop.f32.mrb[0].mxu0
      %1709 = vdwg.mxu0
      %v1710 = vrcp.pop %v1551
      %v1711 = vrcp.pop %v1554
      %v1712 = vrcp.pop %v1557
      %v1713 = vrcp.pop %v1560
      %v1714 = vrcp.pop %v1563
      %v1715 = vrcp.pop %v1566
      %v1716 = vrcp.pop %v1569
      %v1717 = vrcp.pop %v1572
      %v1718 = vmul.f32 %v1672, %v1710
      %v1719 = vmul.f32 %v1677, %v1711
      %v1720 = vmul.f32 %v1682, %v1712
      %v1721 = vmul.f32 %v1687, %v1713
      %v1722 = vmul.f32 %v1692, %v1714
      %v1723 = vmul.f32 %v1697, %v1715
      %v1724 = vmul.f32 %v1702, %v1716
      %v1725 = vmul.f32 %v1707, %v1717
      %1726 = vst.msk [vmem:[%s401] sm:$0xff] %vm1243, %v1718
      %1727 = vst.msk [vmem:[%s401 + $0x8] sm:$0xff] %vm1243, %v1719
      %1728 = vst.msk [vmem:[%s401 + $0x10] sm:$0xff] %vm1243, %v1720
      %1729 = vst.msk [vmem:[%s401 + $0x18] sm:$0xff] %vm1243, %v1721
      %1730 = vst.msk [vmem:[%s401 + $0x20] sm:$0xff] %vm1243, %v1722
      %1731 = vst.msk [vmem:[%s401 + $0x28] sm:$0xff] %vm1243, %v1723
      %1732 = vst.msk [vmem:[%s401 + $0x30] sm:$0xff] %vm1243, %v1724
      %1733 = vst.msk [vmem:[%s401 + $0x38] sm:$0xff] %vm1243, %v1725
      %s1734 = smul.u32 8, %s23
      %p1735 = scmp.lt.s32.totalorder %s22, 1
      %s1736 = scalar_select %p1735, %s22, 1
      %p1737 = scmp.lt.s32.totalorder %s21, 1
      %s1738 = scalar_select %p1737, %s21, 1
      %p1739 = scmp.lt.s32.totalorder %s1734, 7
      %s1740 = scalar_select %p1739, %s1734, 7
      %s1741 = smul.addr %s1738, 8
      %s1742 = sadd.s32 %s1740, %s1741
      %s1743 = smul.addr %s1736, 16
      %s1744 = sadd.s32 %s1742, %s1743
      %s1745 = smul.addr %s1744, 8
      %s1746 = scalar_lea.vmem %s5, %s1745
      // Predicated region
      $region45: #{tpu_custom_call.1} parent=39 // pred_check
        %p1747 = pneg %p195
      $region46: #{tpu_custom_call.1} parent=39 // pred_check_branch
        %1749 = sbr.rel (%p1747) target = $region48
      $region47: #{tpu_custom_call.1} parent=39 // pred_region
        %s1750 = smul.u32 8, %s23
      $region48: #{tpu_custom_call.1} parent=39 // pred_fallthru
        _
    $region40: #{tpu_custom_call.1} parent=5 // pred_fallthru
      _
    %p1751 = scmp.le.s32.totalorder 2, %s11
    // Predicated region
    $region49: #{tpu_custom_call.1} parent=5 // pred_check
      %p1752 = pneg %p1751
    $region50: #{tpu_custom_call.1} parent=5 // pred_check_branch
      %1754 = sbr.rel (%p1752) target = $region52
    $region51: #{tpu_custom_call.1} parent=5 // pred_region
      %s1755 = ssub.s32 %s11, 2
      // Predicated region
      $region53: #{tpu_custom_call.1} parent=51 // pred_check
        %p1756 = pneg %p201
      $region54: #{tpu_custom_call.1} parent=51 // pred_check_branch
        %1758 = sbr.rel (%p1756) target = $region56
      $region55: #{tpu_custom_call.1} parent=51 // pred_region
        %s1759 = smul.u32 8, %s26
        %p1760 = scmp.lt.s32.totalorder %s25, 1
        %s1761 = scalar_select %p1760, %s25, 1
        %p1762 = scmp.lt.s32.totalorder %s24, 1
        %s1763 = scalar_select %p1762, %s24, 1
        %p1764 = scmp.lt.s32.totalorder %s1759, 7
        %s1765 = scalar_select %p1764, %s1759, 7
        %s1766 = smul.addr %s1763, 8
        %s1767 = sadd.s32 %s1765, %s1766
        %s1768 = smul.addr %s1761, 16
        %s1769 = sadd.s32 %s1767, %s1768
        %s1770 = smul.addr %s1769, 8
        %s1771 = scalar_lea.vmem %s5, %s1770
      $region56: #{tpu_custom_call.1} parent=51 // pred_fallthru
        _
    $region52: #{tpu_custom_call.1} parent=5 // pred_fallthru
      _
  $region6: #{tpu_custom_call.1} parent=0 // loop_footer
    %s15 = sadd.s32 1, %s11
  $region7: #{tpu_custom_call.1} parent=0 // loop_footer_branch
    %10 = sbr.rel target = $region3
  $region8: #{tpu_custom_call.1} parent=0 // loop_exit
    _

</llo_original>
